<compile_context>
chip_gen: v6e
topology: v6e:2x2x1
jax: 0.10.0
libtpu: 0.0.40
codegen_flags: <defaults>
</compile_context>

<pallas_src>
import math

import jax
import jax.numpy as jnp
from jax.experimental import pallas as pl
from jax.experimental.pallas import tpu as pltpu

E = 128            # embed_dim
H = 8              # num_heads
DH = E // H        # head_dim = 16
HID = 32           # fc_1 out features
OUT = 6            # fc_2 out features
OUT_PAD = 128      # lane-dense padded output width


# --------------------------------------------------------------------------- #
# in-kernel helpers
# --------------------------------------------------------------------------- #
def _head_sum_bcast(x):
    """Segmented sum over the 128-lane axis for the head-strided layout.

    Head h owns lanes {h, h+8, ..., h+120} (stride 8).  Four roll+add steps
    (XLU slot, lane-dense) leave EVERY lane holding its head's sum, already
    broadcast across the head's 16 lanes.  x: (..., 128) f32.
    """
    shape = x.shape
    x2 = x.reshape(-1, E)
    for sh in (8, 16, 32, 64):
        x2 = x2 + pltpu.roll(x2, shift=sh, axis=1)
    return x2.reshape(shape)


# --------------------------------------------------------------------------- #
# fused kernel: encoder MHA -> decoder MHA -> fc_1/ReLU/fc_2
# --------------------------------------------------------------------------- #
def _make_fused_kernel(Bt, S, use_enc_mask, use_dec_mask):
    scale = 1.0 / math.sqrt(DH)
    rows = Bt * S

    def kernel(*refs):
        it = iter(refs)
        m_ref = next(it)                                   # (Bt, S, E) bf16
        o_ref = next(it)                                   # (Bt, 1, E) bf16
        enc_mask = next(it)[...] if use_enc_mask else None  # (S, S, 1) f32
        dec_mask = next(it)[...] if use_dec_mask else None  # (S, 1) f32
        (enc_in_w, enc_in_b, enc_wo, enc_bo,
         dec_wq, dec_bq, dec_wkv, dec_bkv, dec_wo, dec_bo,
         fc1_w, fc1_b, fc2_w, fc2_b, y_ref) = tuple(it)

        # ---------------- encoder: self-attention over M --------------------
        x = m_ref[...].reshape(rows, E)                     # bf16
        qkv = jnp.dot(x, enc_in_w[...],
                      preferred_element_type=jnp.float32) + enc_in_b[...]
        q = qkv[:, 0 * E:1 * E].reshape(Bt, S, E) * scale   # f32, head-strided lanes
        k = qkv[:, 1 * E:2 * E].reshape(Bt, S, E)
        v = qkv[:, 2 * E:3 * E].reshape(Bt, S, E)

        # scores for all heads at once, lane-dense VPU + XLU roll reductions
        prod = q[:, :, None, :] * k[:, None, :, :]          # (Bt, Sq, Sk, 128)
        s = _head_sum_bcast(prod)                           # per-head scores bcast
        if enc_mask is not None:
            s = s + enc_mask[None, :, :, :]                 # (1,S,S,1) broadcast
        m = jnp.max(s, axis=2, keepdims=True)               # per-head max over keys
        p = jnp.exp(s - m)
        denom = jnp.sum(p, axis=2, keepdims=True)
        p = p * pl.reciprocal(denom, approx=True)
        ctx = jnp.sum(p * v[:, None, :, :], axis=2)         # (Bt, Sq, 128) head-packed
        C = (jnp.dot(ctx.reshape(rows, E).astype(jnp.bfloat16), enc_wo[...],
                     preferred_element_type=jnp.float32) + enc_bo[...])

        # ---------------- decoder: cross-attention (query length 1) ---------
        c2 = C.astype(jnp.bfloat16)                         # (rows, E), stays in VMEM
        ob = o_ref[...].reshape(Bt, E)                      # bf16
        qd = (jnp.dot(ob, dec_wq[...], preferred_element_type=jnp.float32)
              + dec_bq[...]) * scale                        # (Bt, E) f32
        kv = jnp.dot(c2, dec_wkv[...],
                     preferred_element_type=jnp.float32) + dec_bkv[...]
        kd = kv[:, :E].reshape(Bt, S, E)                    # f32, head-strided
        vd = kv[:, E:].reshape(Bt, S, E)

        prod_d = qd[:, None, :] * kd                        # (Bt, S, 128)
        sd = _head_sum_bcast(prod_d)
        if dec_mask is not None:
            sd = sd + dec_mask[None, :, :]                  # (1,S,1) broadcast
        md = jnp.max(sd, axis=1, keepdims=True)
        pd = jnp.exp(sd - md)
        dend = jnp.sum(pd, axis=1, keepdims=True)
        pd = pd * pl.reciprocal(dend, approx=True)
        ctx_d = jnp.sum(pd * vd, axis=1)                    # (Bt, 128) head-packed
        d = (jnp.dot(ctx_d.astype(jnp.bfloat16), dec_wo[...],
                     preferred_element_type=jnp.float32) + dec_bo[...])

        # ---------------- MLP head (lane-padded to 128 outputs) -------------
        h1 = jnp.maximum(
            jnp.dot(d.astype(jnp.bfloat16), fc1_w[...],
                    preferred_element_type=jnp.float32) + fc1_b[...], 0.0)
        y = (jnp.dot(h1.astype(jnp.bfloat16), fc2_w[...],
                     preferred_element_type=jnp.float32) + fc2_b[...])
        y_ref[...] = y.reshape(Bt, 1, OUT_PAD)

    return kernel


# --------------------------------------------------------------------------- #
# wrapper
# --------------------------------------------------------------------------- #
def dqn_policy_forward(M, o, encoder_masks, decoder_masks, params, *, block_b=64):
    """Matches DQN_POLICY.forward: M (B,S,128), o (B,128) -> (B,6)."""
    B, S, Ein = M.shape
    assert Ein == E
    use_enc_mask = encoder_masks is not None
    use_dec_mask = decoder_masks is not None

    # Balanced batch tiles: minimal padding, single grid step for B <= block_b.
    n_tiles = max(1, -(-B // block_b))
    Bt = -(-B // n_tiles)
    B_pad = n_tiles * Bt

    Mb = M.astype(jnp.bfloat16)                             # bf16 HBM->VMEM DMA
    ob = o.astype(jnp.bfloat16)
    if B_pad != B:                                          # at most n_tiles-1 rows
        Mb = jnp.concatenate(
            [Mb, jnp.zeros((B_pad - B, S, E), jnp.bfloat16)], axis=0)
        ob = jnp.concatenate(
            [ob, jnp.zeros((B_pad - B, E), jnp.bfloat16)], axis=0)
    o3 = ob[:, None, :]                                     # (B_pad, 1, E)

    in_specs = [pl.BlockSpec((Bt, S, E), lambda b: (b, 0, 0)),
                pl.BlockSpec((Bt, 1, E), lambda b: (b, 0, 0))]
    args = [Mb, o3]
    if use_enc_mask:
        # pass as (S, S, 1) so the in-kernel broadcast is lane-only (no transpose)
        in_specs.append(pl.BlockSpec((S, S, 1), lambda b: (0, 0, 0)))
        args.append(encoder_masks.astype(jnp.float32)[:, :, None])
    if use_dec_mask:
        in_specs.append(pl.BlockSpec((S, 1), lambda b: (0, 0)))
        args.append(jnp.reshape(decoder_masks.astype(jnp.float32), (S, 1)))
    for name in ("enc_in_w", "enc_in_b", "enc_wo", "enc_bo",
                 "dec_wq", "dec_bq", "dec_wkv", "dec_bkv", "dec_wo", "dec_bo",
                 "fc1_w", "fc1_b", "fc2_w", "fc2_b"):
        w = params[name]
        in_specs.append(pl.BlockSpec(w.shape, lambda b: (0, 0)))
        args.append(w)

    y = pl.pallas_call(
        _make_fused_kernel(Bt, S, use_enc_mask, use_dec_mask),
        out_shape=jax.ShapeDtypeStruct((B_pad, 1, OUT_PAD), jnp.float32),
        grid=(n_tiles,),
        in_specs=in_specs,
        out_specs=pl.BlockSpec((Bt, 1, OUT_PAD), lambda b: (b, 0, 0)),
        compiler_params=pltpu.CompilerParams(
            dimension_semantics=("parallel",)),
    )(*args)
    return y[:B, 0, :OUT]


# --------------------------------------------------------------------------- #
# parameters
# --------------------------------------------------------------------------- #
def init_raw_params(key):
    """f32 parameters mirroring the PyTorch module's state_dict layout."""
    ks = jax.random.split(key, 6)

    def lin(k, out_f, in_f, scale=0.05):
        kw, kb = jax.random.split(k)
        w = jax.random.normal(kw, (out_f, in_f), jnp.float32) * scale
        b = jax.random.normal(kb, (out_f,), jnp.float32) * scale
        return w, b

    enc_in_w, enc_in_b = lin(ks[0], 3 * E, E)     # packed [q;k;v] in_proj
    enc_out_w, enc_out_b = lin(ks[1], E, E)
    dec_in_w, dec_in_b = lin(ks[2], 3 * E, E)
    dec_out_w, dec_out_b = lin(ks[3], E, E)
    fc1_w, fc1_b = lin(ks[4], HID, E)
    fc2_w, fc2_b = lin(ks[5], OUT, HID)
    return dict(enc_in_w=enc_in_w, enc_in_b=enc_in_b,
                enc_out_w=enc_out_w, enc_out_b=enc_out_b,
                dec_in_w=dec_in_w, dec_in_b=dec_in_b,
                dec_out_w=dec_out_w, dec_out_b=dec_out_b,
                fc1_w=fc1_w, fc1_b=fc1_b, fc2_w=fc2_w, fc2_b=fc2_b)


def pack_params(raw):
    """Transpose / head-stride-permute / lane-pad / bf16-cast weights for the kernel.

    Head-strided lane layout: new lane l <- original feature (l % H)*DH + l // H,
    so head h = l % 8 owns lanes {h, h+8, ..., h+120}.  The permutation is applied
    to the q/k/v projection OUTPUT columns and to the out_proj INPUT rows, making
    it invisible outside the kernel.
    """
    bf = lambda a: a.astype(jnp.bfloat16)
    f32 = jnp.float32
    perm = (jnp.arange(E) % H) * DH + (jnp.arange(E) // H)

    def pcols(w_t):                     # permute output columns of an (E, E) block
        return w_t[:, perm]

    enc_in_w_t = raw["enc_in_w"].T                              # (E, 3E): [q|k|v]
    enc_in_w = jnp.concatenate([pcols(enc_in_w_t[:, :E]),
                                pcols(enc_in_w_t[:, E:2 * E]),
                                pcols(enc_in_w_t[:, 2 * E:])], axis=1)
    enc_in_b = jnp.concatenate([raw["enc_in_b"][:E][perm],
                                raw["enc_in_b"][E:2 * E][perm],
                                raw["enc_in_b"][2 * E:][perm]])[None, :]
    enc_wo = raw["enc_out_w"].T[perm, :]                        # rows permuted

    dec_in_w_t = raw["dec_in_w"].T
    dec_wq = pcols(dec_in_w_t[:, :E])
    dec_bq = raw["dec_in_b"][:E][perm][None, :]
    dec_wkv = jnp.concatenate([pcols(dec_in_w_t[:, E:2 * E]),
                               pcols(dec_in_w_t[:, 2 * E:])], axis=1)
    dec_bkv = jnp.concatenate([raw["dec_in_b"][E:2 * E][perm],
                               raw["dec_in_b"][2 * E:][perm]])[None, :]
    dec_wo = raw["dec_out_w"].T[perm, :]

    fc1_w_t = jnp.zeros((E, OUT_PAD), f32).at[:, :HID].set(raw["fc1_w"].T)
    fc1_b = jnp.zeros((1, OUT_PAD), f32).at[0, :HID].set(raw["fc1_b"])
    fc2_w_t = jnp.zeros((OUT_PAD, OUT_PAD), f32).at[:HID, :OUT].set(raw["fc2_w"].T)
    fc2_b = jnp.zeros((1, OUT_PAD), f32).at[0, :OUT].set(raw["fc2_b"])

    return dict(
        enc_in_w=bf(enc_in_w), enc_in_b=enc_in_b.astype(f32),
        enc_wo=bf(enc_wo), enc_bo=raw["enc_out_b"][None, :].astype(f32),
        dec_wq=bf(dec_wq), dec_bq=dec_bq.astype(f32),
        dec_wkv=bf(dec_wkv), dec_bkv=dec_bkv.astype(f32),
        dec_wo=bf(dec_wo), dec_bo=raw["dec_out_b"][None, :].astype(f32),
        fc1_w=bf(fc1_w_t), fc1_b=fc1_b,
        fc2_w=bf(fc2_w_t), fc2_b=fc2_b,
    )


# --------------------------------------------------------------------------- #
# pure-JAX f32 reference (nn.MultiheadAttention semantics)
# --------------------------------------------------------------------------- #
def reference_forward(M, o, enc_mask, dec_mask, raw):
    def mha(q_in, kv_in, in_w, in_b, out_w, out_b, mask):
        wq, wk, wv = in_w[:E], in_w[E:2 * E], in_w[2 * E:]
        bq, bk, bv = in_b[:E], in_b[E:2 * E], in_b[2 * E:]
        q = q_in @ wq.T + bq
        k = kv_in @ wk.T + bk
        v = kv_in @ wv.T + bv
        B_, Lq, _ = q.shape
        Lk = k.shape[1]
        qh = q.reshape(B_, Lq, H, DH).transpose(0, 2, 1, 3)
        kh = k.reshape(B_, Lk, H, DH).transpose(0, 2, 1, 3)
        vh = v.reshape(B_, Lk, H, DH).transpose(0, 2, 1, 3)
        s = jnp.einsum("bhqd,bhkd->bhqk", qh, kh) / math.sqrt(DH)
        if mask is not None:
            s = s + mask
        p = jax.nn.softmax(s, axis=-1)
        ctx = jnp.einsum("bhqk,bhkd->bhqd", p, vh)
        ctx = ctx.transpose(0, 2, 1, 3).reshape(B_, Lq, E)
        return ctx @ out_w.T + out_b

    C = mha(M, M, raw["enc_in_w"], raw["enc_in_b"],
            raw["enc_out_w"], raw["enc_out_b"], enc_mask)
    d = mha(o[:, None, :], C, raw["dec_in_w"], raw["dec_in_b"],
            raw["dec_out_w"], raw["dec_out_b"], dec_mask)
    hdn = jax.nn.relu(d @ raw["fc1_w"].T + raw["fc1_b"])
    y = hdn @ raw["fc2_w"].T + raw["fc2_b"]
    return y[:, 0, :]


# --------------------------------------------------------------------------- #
# main
# --------------------------------------------------------------------------- #
if __name__ == "__main__":
    B, S = 2, 8
    key = jax.random.PRNGKey(0)
    k_m, k_o, k_em, k_dm, k_p = jax.random.split(key, 5)

    M = jax.random.normal(k_m, (B, S, E), jnp.float32)
    o = jax.random.normal(k_o, (B, E), jnp.float32)
    # Additive float attention masks (PyTorch float attn_mask semantics).
    encoder_masks = jax.random.normal(k_em, (S, S), jnp.float32) * 0.1
    decoder_masks = jax.random.normal(k_dm, (1, S), jnp.float32) * 0.1

    raw = init_raw_params(k_p)
    params = pack_params(raw)

    out = dqn_policy_forward(M, o, encoder_masks, decoder_masks, params)
    out = jax.block_until_ready(out)
    assert out.shape == (B, OUT) and out.dtype == jnp.float32
    assert bool(jnp.all(jnp.isfinite(out)))
    ref = reference_forward(M, o, encoder_masks, decoder_masks, raw)
    assert bool(jnp.allclose(out, ref, rtol=5e-2, atol=5e-3)), "mismatch vs f32 reference"

    # mask=None branches (specialized kernel variant with no mask inputs).
    out2 = jax.block_until_ready(dqn_policy_forward(M, o, None, None, params))
    assert out2.shape == (B, OUT)
    ref2 = reference_forward(M, o, None, None, raw)
    assert bool(jnp.allclose(out2, ref2, rtol=5e-2, atol=5e-3)), "mismatch (no mask)"

    print("KERNEL_OK")
</pallas_src>

<mosaic_0001>
module attributes {stable_mosaic.version = 11 : i64} {
  func.func @kernel(%arg0: i32, %arg1: memref<2x8x128xbf16, #tpu.memory_space<vmem>>, %arg2: memref<2x1x128xbf16, #tpu.memory_space<vmem>>, %arg3: memref<8x8x1xf32, #tpu.memory_space<vmem>>, %arg4: memref<8x1xf32, #tpu.memory_space<vmem>>, %arg5: memref<128x384xbf16, #tpu.memory_space<vmem>>, %arg6: memref<1x384xf32, #tpu.memory_space<vmem>>, %arg7: memref<128x128xbf16, #tpu.memory_space<vmem>>, %arg8: memref<1x128xf32, #tpu.memory_space<vmem>>, %arg9: memref<128x128xbf16, #tpu.memory_space<vmem>>, %arg10: memref<1x128xf32, #tpu.memory_space<vmem>>, %arg11: memref<128x256xbf16, #tpu.memory_space<vmem>>, %arg12: memref<1x256xf32, #tpu.memory_space<vmem>>, %arg13: memref<128x128xbf16, #tpu.memory_space<vmem>>, %arg14: memref<1x128xf32, #tpu.memory_space<vmem>>, %arg15: memref<128x128xbf16, #tpu.memory_space<vmem>>, %arg16: memref<1x128xf32, #tpu.memory_space<vmem>>, %arg17: memref<128x128xbf16, #tpu.memory_space<vmem>>, %arg18: memref<1x128xf32, #tpu.memory_space<vmem>>, %arg19: memref<2x1x128xf32, #tpu.memory_space<vmem>>) attributes {dimension_semantics = [#tpu.dimension_semantics<parallel>], iteration_bounds = array<i64: 1>, scalar_prefetch = 0 : i64, scratch_operands = 0 : i64, tpu.core_type = #tpu.core_type<tc>, window_params = [{transform_indices = @transform_0, window_bounds = array<i64: 2, 8, 128>}, {transform_indices = @transform_1, window_bounds = array<i64: 2, 1, 128>}, {pipeline_mode = #tpu.pipeline_mode<synchronous>, transform_indices = @transform_2, window_bounds = array<i64: 8, 8, 1>}, {pipeline_mode = #tpu.pipeline_mode<synchronous>, transform_indices = @transform_3, window_bounds = array<i64: 8, 1>}, {pipeline_mode = #tpu.pipeline_mode<synchronous>, transform_indices = @transform_4, window_bounds = array<i64: 128, 384>}, {pipeline_mode = #tpu.pipeline_mode<synchronous>, transform_indices = @transform_5, window_bounds = array<i64: 1, 384>}, {pipeline_mode = #tpu.pipeline_mode<synchronous>, transform_indices = @transform_6, window_bounds = array<i64: 128, 128>}, {pipeline_mode = #tpu.pipeline_mode<synchronous>, transform_indices = @transform_7, window_bounds = array<i64: 1, 128>}, {pipeline_mode = #tpu.pipeline_mode<synchronous>, transform_indices = @transform_8, window_bounds = array<i64: 128, 128>}, {pipeline_mode = #tpu.pipeline_mode<synchronous>, transform_indices = @transform_9, window_bounds = array<i64: 1, 128>}, {pipeline_mode = #tpu.pipeline_mode<synchronous>, transform_indices = @transform_10, window_bounds = array<i64: 128, 256>}, {pipeline_mode = #tpu.pipeline_mode<synchronous>, transform_indices = @transform_11, window_bounds = array<i64: 1, 256>}, {pipeline_mode = #tpu.pipeline_mode<synchronous>, transform_indices = @transform_12, window_bounds = array<i64: 128, 128>}, {pipeline_mode = #tpu.pipeline_mode<synchronous>, transform_indices = @transform_13, window_bounds = array<i64: 1, 128>}, {pipeline_mode = #tpu.pipeline_mode<synchronous>, transform_indices = @transform_14, window_bounds = array<i64: 128, 128>}, {pipeline_mode = #tpu.pipeline_mode<synchronous>, transform_indices = @transform_15, window_bounds = array<i64: 1, 128>}, {pipeline_mode = #tpu.pipeline_mode<synchronous>, transform_indices = @transform_16, window_bounds = array<i64: 128, 128>}, {pipeline_mode = #tpu.pipeline_mode<synchronous>, transform_indices = @transform_17, window_bounds = array<i64: 1, 128>}, {transform_indices = @transform_18, window_bounds = array<i64: 2, 1, 128>}]} {
    %c0 = arith.constant 0 : index
    %c0_0 = arith.constant 0 : index
    %c0_1 = arith.constant 0 : index
    %0 = vector.load %arg3[%c0, %c0_0, %c0_1] : memref<8x8x1xf32, #tpu.memory_space<vmem>>, vector<8x8x1xf32>
    %c0_2 = arith.constant 0 : index
    %c0_3 = arith.constant 0 : index
    %1 = vector.load %arg4[%c0_2, %c0_3] : memref<8x1xf32, #tpu.memory_space<vmem>>, vector<8x1xf32>
    %c0_4 = arith.constant 0 : index
    %c0_5 = arith.constant 0 : index
    %c0_6 = arith.constant 0 : index
    %2 = vector.load %arg1[%c0_4, %c0_5, %c0_6] : memref<2x8x128xbf16, #tpu.memory_space<vmem>>, vector<2x8x128xbf16>
    %3 = vector.shape_cast %2 : vector<2x8x128xbf16> to vector<16x128xbf16>
    %c0_7 = arith.constant 0 : index
    %c0_8 = arith.constant 0 : index
    %4 = vector.load %arg5[%c0_7, %c0_8] : memref<128x384xbf16, #tpu.memory_space<vmem>>, vector<128x384xbf16>
    %cst = arith.constant dense<0.000000e+00> : vector<16x384xf32>
    %5 = tpu.matmul %3, %4, %cst {dimension_numbers = #tpu.dot_dimension_numbers<[1], [0], [0], [1], [0, 0, 1, 1], [], []>} : vector<16x128xbf16>, vector<128x384xbf16>, vector<16x384xf32> -> vector<16x384xf32>
    %c0_9 = arith.constant 0 : index
    %c0_10 = arith.constant 0 : index
    %6 = vector.load %arg6[%c0_9, %c0_10] : memref<1x384xf32, #tpu.memory_space<vmem>>, vector<1x384xf32>
    %7 = vector.broadcast %6 : vector<1x384xf32> to vector<16x384xf32>
    %8 = arith.addf %5, %7 : vector<16x384xf32>
    %9 = vector.extract_strided_slice %8 {offsets = [0, 0], sizes = [16, 128], strides = [1, 1]} : vector<16x384xf32> to vector<16x128xf32>
    %10 = vector.shape_cast %9 : vector<16x128xf32> to vector<2x8x128xf32>
    %cst_11 = arith.constant 2.500000e-01 : f32
    %11 = vector.broadcast %cst_11 : f32 to vector<2x8x128xf32>
    %12 = arith.mulf %10, %11 : vector<2x8x128xf32>
    %13 = vector.extract_strided_slice %8 {offsets = [0, 128], sizes = [16, 128], strides = [1, 1]} : vector<16x384xf32> to vector<16x128xf32>
    %14 = vector.shape_cast %13 : vector<16x128xf32> to vector<2x8x128xf32>
    %15 = vector.extract_strided_slice %8 {offsets = [0, 256], sizes = [16, 128], strides = [1, 1]} : vector<16x384xf32> to vector<16x128xf32>
    %16 = vector.shape_cast %15 : vector<16x128xf32> to vector<2x8x128xf32>
    %17 = vector.shape_cast %12 : vector<2x8x128xf32> to vector<2x8x1x128xf32>
    %18 = vector.shape_cast %14 : vector<2x8x128xf32> to vector<2x1x8x128xf32>
    %19 = vector.broadcast %17 : vector<2x8x1x128xf32> to vector<2x8x8x128xf32>
    %20 = vector.broadcast %18 : vector<2x1x8x128xf32> to vector<2x8x8x128xf32>
    %21 = arith.mulf %19, %20 : vector<2x8x8x128xf32>
    %22 = vector.shape_cast %21 : vector<2x8x8x128xf32> to vector<128x128xf32>
    %c8_i32 = arith.constant 8 : i32
    %23 = tpu.dynamic_rotate %22 by %c8_i32 dim 1 : vector<128x128xf32>, i32 -> vector<128x128xf32>
    %24 = arith.addf %22, %23 : vector<128x128xf32>
    %c16_i32 = arith.constant 16 : i32
    %25 = tpu.dynamic_rotate %24 by %c16_i32 dim 1 : vector<128x128xf32>, i32 -> vector<128x128xf32>
    %26 = arith.addf %24, %25 : vector<128x128xf32>
    %c32_i32 = arith.constant 32 : i32
    %27 = tpu.dynamic_rotate %26 by %c32_i32 dim 1 : vector<128x128xf32>, i32 -> vector<128x128xf32>
    %28 = arith.addf %26, %27 : vector<128x128xf32>
    %c64_i32 = arith.constant 64 : i32
    %29 = tpu.dynamic_rotate %28 by %c64_i32 dim 1 : vector<128x128xf32>, i32 -> vector<128x128xf32>
    %30 = arith.addf %28, %29 : vector<128x128xf32>
    %31 = vector.shape_cast %30 : vector<128x128xf32> to vector<2x8x8x128xf32>
    %32 = vector.shape_cast %0 : vector<8x8x1xf32> to vector<1x8x8x1xf32>
    %33 = vector.broadcast %32 : vector<1x8x8x1xf32> to vector<2x8x8x128xf32>
    %34 = arith.addf %31, %33 : vector<2x8x8x128xf32>
    %cst_12 = arith.constant dense<0xFF800000> : vector<2x8x128xf32>
    %35 = vector.multi_reduction <maximumf>, %34, %cst_12 [2] : vector<2x8x8x128xf32> to vector<2x8x128xf32>
    %36 = vector.shape_cast %35 : vector<2x8x128xf32> to vector<2x8x1x128xf32>
    %37 = vector.broadcast %36 : vector<2x8x1x128xf32> to vector<2x8x8x128xf32>
    %38 = arith.subf %34, %37 : vector<2x8x8x128xf32>
    %39 = math.exp %38 : vector<2x8x8x128xf32>
    %cst_13 = arith.constant dense<0.000000e+00> : vector<2x8x128xf32>
    %40 = vector.multi_reduction <add>, %39, %cst_13 [2] : vector<2x8x8x128xf32> to vector<2x8x128xf32>
    %41 = vector.shape_cast %40 : vector<2x8x128xf32> to vector<2x8x1x128xf32>
    %42 = tpu.reciprocal %41 {approx = true} : vector<2x8x1x128xf32> -> vector<2x8x1x128xf32>
    %43 = vector.broadcast %42 : vector<2x8x1x128xf32> to vector<2x8x8x128xf32>
    %44 = arith.mulf %39, %43 : vector<2x8x8x128xf32>
    %45 = vector.shape_cast %16 : vector<2x8x128xf32> to vector<2x1x8x128xf32>
    %46 = vector.broadcast %45 : vector<2x1x8x128xf32> to vector<2x8x8x128xf32>
    %47 = arith.mulf %44, %46 : vector<2x8x8x128xf32>
    %cst_14 = arith.constant dense<0.000000e+00> : vector<2x8x128xf32>
    %48 = vector.multi_reduction <add>, %47, %cst_14 [2] : vector<2x8x8x128xf32> to vector<2x8x128xf32>
    %49 = vector.shape_cast %48 : vector<2x8x128xf32> to vector<16x128xf32>
    %50 = arith.truncf %49 : vector<16x128xf32> to vector<16x128xbf16>
    %c0_15 = arith.constant 0 : index
    %c0_16 = arith.constant 0 : index
    %51 = vector.load %arg7[%c0_15, %c0_16] : memref<128x128xbf16, #tpu.memory_space<vmem>>, vector<128x128xbf16>
    %cst_17 = arith.constant dense<0.000000e+00> : vector<16x128xf32>
    %52 = tpu.matmul %50, %51, %cst_17 {dimension_numbers = #tpu.dot_dimension_numbers<[1], [0], [0], [1], [0, 0, 1, 1], [], []>} : vector<16x128xbf16>, vector<128x128xbf16>, vector<16x128xf32> -> vector<16x128xf32>
    %c0_18 = arith.constant 0 : index
    %c0_19 = arith.constant 0 : index
    %53 = vector.load %arg8[%c0_18, %c0_19] : memref<1x128xf32, #tpu.memory_space<vmem>>, vector<1x128xf32>
    %54 = vector.broadcast %53 : vector<1x128xf32> to vector<16x128xf32>
    %55 = arith.addf %52, %54 : vector<16x128xf32>
    %56 = arith.truncf %55 : vector<16x128xf32> to vector<16x128xbf16>
    %c0_20 = arith.constant 0 : index
    %c0_21 = arith.constant 0 : index
    %c0_22 = arith.constant 0 : index
    %57 = vector.load %arg2[%c0_20, %c0_21, %c0_22] : memref<2x1x128xbf16, #tpu.memory_space<vmem>>, vector<2x1x128xbf16>
    %58 = vector.shape_cast %57 : vector<2x1x128xbf16> to vector<2x128xbf16>
    %c0_23 = arith.constant 0 : index
    %c0_24 = arith.constant 0 : index
    %59 = vector.load %arg9[%c0_23, %c0_24] : memref<128x128xbf16, #tpu.memory_space<vmem>>, vector<128x128xbf16>
    %cst_25 = arith.constant dense<0.000000e+00> : vector<2x128xf32>
    %60 = tpu.matmul %58, %59, %cst_25 {dimension_numbers = #tpu.dot_dimension_numbers<[1], [0], [0], [1], [0, 0, 1, 1], [], []>} : vector<2x128xbf16>, vector<128x128xbf16>, vector<2x128xf32> -> vector<2x128xf32>
    %c0_26 = arith.constant 0 : index
    %c0_27 = arith.constant 0 : index
    %61 = vector.load %arg10[%c0_26, %c0_27] : memref<1x128xf32, #tpu.memory_space<vmem>>, vector<1x128xf32>
    %62 = vector.broadcast %61 : vector<1x128xf32> to vector<2x128xf32>
    %63 = arith.addf %60, %62 : vector<2x128xf32>
    %cst_28 = arith.constant 2.500000e-01 : f32
    %64 = vector.broadcast %cst_28 : f32 to vector<2x128xf32>
    %65 = arith.mulf %63, %64 : vector<2x128xf32>
    %c0_29 = arith.constant 0 : index
    %c0_30 = arith.constant 0 : index
    %66 = vector.load %arg11[%c0_29, %c0_30] : memref<128x256xbf16, #tpu.memory_space<vmem>>, vector<128x256xbf16>
    %cst_31 = arith.constant dense<0.000000e+00> : vector<16x256xf32>
    %67 = tpu.matmul %56, %66, %cst_31 {dimension_numbers = #tpu.dot_dimension_numbers<[1], [0], [0], [1], [0, 0, 1, 1], [], []>} : vector<16x128xbf16>, vector<128x256xbf16>, vector<16x256xf32> -> vector<16x256xf32>
    %c0_32 = arith.constant 0 : index
    %c0_33 = arith.constant 0 : index
    %68 = vector.load %arg12[%c0_32, %c0_33] : memref<1x256xf32, #tpu.memory_space<vmem>>, vector<1x256xf32>
    %69 = vector.broadcast %68 : vector<1x256xf32> to vector<16x256xf32>
    %70 = arith.addf %67, %69 : vector<16x256xf32>
    %71 = vector.extract_strided_slice %70 {offsets = [0, 0], sizes = [16, 128], strides = [1, 1]} : vector<16x256xf32> to vector<16x128xf32>
    %72 = vector.shape_cast %71 : vector<16x128xf32> to vector<2x8x128xf32>
    %73 = vector.extract_strided_slice %70 {offsets = [0, 128], sizes = [16, 128], strides = [1, 1]} : vector<16x256xf32> to vector<16x128xf32>
    %74 = vector.shape_cast %73 : vector<16x128xf32> to vector<2x8x128xf32>
    %75 = vector.shape_cast %65 : vector<2x128xf32> to vector<2x1x128xf32>
    %76 = vector.broadcast %75 : vector<2x1x128xf32> to vector<2x8x128xf32>
    %77 = arith.mulf %76, %72 : vector<2x8x128xf32>
    %78 = vector.shape_cast %77 : vector<2x8x128xf32> to vector<16x128xf32>
    %c8_i32_34 = arith.constant 8 : i32
    %79 = tpu.dynamic_rotate %78 by %c8_i32_34 dim 1 : vector<16x128xf32>, i32 -> vector<16x128xf32>
    %80 = arith.addf %78, %79 : vector<16x128xf32>
    %c16_i32_35 = arith.constant 16 : i32
    %81 = tpu.dynamic_rotate %80 by %c16_i32_35 dim 1 : vector<16x128xf32>, i32 -> vector<16x128xf32>
    %82 = arith.addf %80, %81 : vector<16x128xf32>
    %c32_i32_36 = arith.constant 32 : i32
    %83 = tpu.dynamic_rotate %82 by %c32_i32_36 dim 1 : vector<16x128xf32>, i32 -> vector<16x128xf32>
    %84 = arith.addf %82, %83 : vector<16x128xf32>
    %c64_i32_37 = arith.constant 64 : i32
    %85 = tpu.dynamic_rotate %84 by %c64_i32_37 dim 1 : vector<16x128xf32>, i32 -> vector<16x128xf32>
    %86 = arith.addf %84, %85 : vector<16x128xf32>
    %87 = vector.shape_cast %86 : vector<16x128xf32> to vector<2x8x128xf32>
    %88 = vector.shape_cast %1 : vector<8x1xf32> to vector<1x8x1xf32>
    %89 = vector.broadcast %88 : vector<1x8x1xf32> to vector<2x8x128xf32>
    %90 = arith.addf %87, %89 : vector<2x8x128xf32>
    %cst_38 = arith.constant dense<0xFF800000> : vector<2x128xf32>
    %91 = vector.multi_reduction <maximumf>, %90, %cst_38 [1] : vector<2x8x128xf32> to vector<2x128xf32>
    %92 = vector.shape_cast %91 : vector<2x128xf32> to vector<2x1x128xf32>
    %93 = vector.broadcast %92 : vector<2x1x128xf32> to vector<2x8x128xf32>
    %94 = arith.subf %90, %93 : vector<2x8x128xf32>
    %95 = math.exp %94 : vector<2x8x128xf32>
    %cst_39 = arith.constant dense<0.000000e+00> : vector<2x128xf32>
    %96 = vector.multi_reduction <add>, %95, %cst_39 [1] : vector<2x8x128xf32> to vector<2x128xf32>
    %97 = vector.shape_cast %96 : vector<2x128xf32> to vector<2x1x128xf32>
    %98 = tpu.reciprocal %97 {approx = true} : vector<2x1x128xf32> -> vector<2x1x128xf32>
    %99 = vector.broadcast %98 : vector<2x1x128xf32> to vector<2x8x128xf32>
    %100 = arith.mulf %95, %99 : vector<2x8x128xf32>
    %101 = arith.mulf %100, %74 : vector<2x8x128xf32>
    %cst_40 = arith.constant dense<0.000000e+00> : vector<2x128xf32>
    %102 = vector.multi_reduction <add>, %101, %cst_40 [1] : vector<2x8x128xf32> to vector<2x128xf32>
    %103 = arith.truncf %102 : vector<2x128xf32> to vector<2x128xbf16>
    %c0_41 = arith.constant 0 : index
    %c0_42 = arith.constant 0 : index
    %104 = vector.load %arg13[%c0_41, %c0_42] : memref<128x128xbf16, #tpu.memory_space<vmem>>, vector<128x128xbf16>
    %cst_43 = arith.constant dense<0.000000e+00> : vector<2x128xf32>
    %105 = tpu.matmul %103, %104, %cst_43 {dimension_numbers = #tpu.dot_dimension_numbers<[1], [0], [0], [1], [0, 0, 1, 1], [], []>} : vector<2x128xbf16>, vector<128x128xbf16>, vector<2x128xf32> -> vector<2x128xf32>
    %c0_44 = arith.constant 0 : index
    %c0_45 = arith.constant 0 : index
    %106 = vector.load %arg14[%c0_44, %c0_45] : memref<1x128xf32, #tpu.memory_space<vmem>>, vector<1x128xf32>
    %107 = vector.broadcast %106 : vector<1x128xf32> to vector<2x128xf32>
    %108 = arith.addf %105, %107 : vector<2x128xf32>
    %109 = arith.truncf %108 : vector<2x128xf32> to vector<2x128xbf16>
    %c0_46 = arith.constant 0 : index
    %c0_47 = arith.constant 0 : index
    %110 = vector.load %arg15[%c0_46, %c0_47] : memref<128x128xbf16, #tpu.memory_space<vmem>>, vector<128x128xbf16>
    %cst_48 = arith.constant dense<0.000000e+00> : vector<2x128xf32>
    %111 = tpu.matmul %109, %110, %cst_48 {dimension_numbers = #tpu.dot_dimension_numbers<[1], [0], [0], [1], [0, 0, 1, 1], [], []>} : vector<2x128xbf16>, vector<128x128xbf16>, vector<2x128xf32> -> vector<2x128xf32>
    %c0_49 = arith.constant 0 : index
    %c0_50 = arith.constant 0 : index
    %112 = vector.load %arg16[%c0_49, %c0_50] : memref<1x128xf32, #tpu.memory_space<vmem>>, vector<1x128xf32>
    %113 = vector.broadcast %112 : vector<1x128xf32> to vector<2x128xf32>
    %114 = arith.addf %111, %113 : vector<2x128xf32>
    %cst_51 = arith.constant 0.000000e+00 : f32
    %115 = vector.broadcast %cst_51 : f32 to vector<2x128xf32>
    %116 = arith.maximumf %114, %115 : vector<2x128xf32>
    %117 = arith.truncf %116 : vector<2x128xf32> to vector<2x128xbf16>
    %c0_52 = arith.constant 0 : index
    %c0_53 = arith.constant 0 : index
    %118 = vector.load %arg17[%c0_52, %c0_53] : memref<128x128xbf16, #tpu.memory_space<vmem>>, vector<128x128xbf16>
    %cst_54 = arith.constant dense<0.000000e+00> : vector<2x128xf32>
    %119 = tpu.matmul %117, %118, %cst_54 {dimension_numbers = #tpu.dot_dimension_numbers<[1], [0], [0], [1], [0, 0, 1, 1], [], []>} : vector<2x128xbf16>, vector<128x128xbf16>, vector<2x128xf32> -> vector<2x128xf32>
    %c0_55 = arith.constant 0 : index
    %c0_56 = arith.constant 0 : index
    %120 = vector.load %arg18[%c0_55, %c0_56] : memref<1x128xf32, #tpu.memory_space<vmem>>, vector<1x128xf32>
    %121 = vector.broadcast %120 : vector<1x128xf32> to vector<2x128xf32>
    %122 = arith.addf %119, %121 : vector<2x128xf32>
    %123 = vector.shape_cast %122 : vector<2x128xf32> to vector<2x1x128xf32>
    %c0_57 = arith.constant 0 : index
    %c0_58 = arith.constant 0 : index
    %c0_59 = arith.constant 0 : index
    %124 = vector.load %arg19[%c0_57, %c0_58, %c0_59] : memref<2x1x128xf32, #tpu.memory_space<vmem>>, vector<2x1x128xf32>
    tpu.vector_store %arg19[%c0_57, %c0_58, %c0_59], %123 {strides = array<i32>} : memref<2x1x128xf32, #tpu.memory_space<vmem>>, vector<2x1x128xf32>,
    return
  }
  func.func @transform_0(%arg0: i32) -> (i32, i32, i32) {
    %c0_i32 = arith.constant 0 : i32
    %c0_i32_0 = arith.constant 0 : i32
    %c0_i32_1 = arith.constant 0 : i32
    return %arg0, %c0_i32, %c0_i32_0 : i32, i32, i32
  }
  func.func @transform_1(%arg0: i32) -> (i32, i32, i32) {
    %c0_i32 = arith.constant 0 : i32
    %c0_i32_0 = arith.constant 0 : i32
    %c0_i32_1 = arith.constant 0 : i32
    return %arg0, %c0_i32, %c0_i32_0 : i32, i32, i32
  }
  func.func @transform_2(%arg0: i32) -> (i32, i32, i32) {
    %c0_i32 = arith.constant 0 : i32
    %c0_i32_0 = arith.constant 0 : i32
    %c0_i32_1 = arith.constant 0 : i32
    %c0_i32_2 = arith.constant 0 : i32
    return %c0_i32, %c0_i32_0, %c0_i32_1 : i32, i32, i32
  }
  func.func @transform_3(%arg0: i32) -> (i32, i32) {
    %c0_i32 = arith.constant 0 : i32
    %c0_i32_0 = arith.constant 0 : i32
    %c0_i32_1 = arith.constant 0 : i32
    return %c0_i32, %c0_i32_0 : i32, i32
  }
  func.func @transform_4(%arg0: i32) -> (i32, i32) {
    %c0_i32 = arith.constant 0 : i32
    %c0_i32_0 = arith.constant 0 : i32
    %c0_i32_1 = arith.constant 0 : i32
    return %c0_i32, %c0_i32_0 : i32, i32
  }
  func.func @transform_5(%arg0: i32) -> (i32, i32) {
    %c0_i32 = arith.constant 0 : i32
    %c0_i32_0 = arith.constant 0 : i32
    %c0_i32_1 = arith.constant 0 : i32
    return %c0_i32, %c0_i32_0 : i32, i32
  }
  func.func @transform_6(%arg0: i32) -> (i32, i32) {
    %c0_i32 = arith.constant 0 : i32
    %c0_i32_0 = arith.constant 0 : i32
    %c0_i32_1 = arith.constant 0 : i32
    return %c0_i32, %c0_i32_0 : i32, i32
  }
  func.func @transform_7(%arg0: i32) -> (i32, i32) {
    %c0_i32 = arith.constant 0 : i32
    %c0_i32_0 = arith.constant 0 : i32
    %c0_i32_1 = arith.constant 0 : i32
    return %c0_i32, %c0_i32_0 : i32, i32
  }
  func.func @transform_8(%arg0: i32) -> (i32, i32) {
    %c0_i32 = arith.constant 0 : i32
    %c0_i32_0 = arith.constant 0 : i32
    %c0_i32_1 = arith.constant 0 : i32
    return %c0_i32, %c0_i32_0 : i32, i32
  }
  func.func @transform_9(%arg0: i32) -> (i32, i32) {
    %c0_i32 = arith.constant 0 : i32
    %c0_i32_0 = arith.constant 0 : i32
    %c0_i32_1 = arith.constant 0 : i32
    return %c0_i32, %c0_i32_0 : i32, i32
  }
  func.func @transform_10(%arg0: i32) -> (i32, i32) {
    %c0_i32 = arith.constant 0 : i32
    %c0_i32_0 = arith.constant 0 : i32
    %c0_i32_1 = arith.constant 0 : i32
    return %c0_i32, %c0_i32_0 : i32, i32
  }
  func.func @transform_11(%arg0: i32) -> (i32, i32) {
    %c0_i32 = arith.constant 0 : i32
    %c0_i32_0 = arith.constant 0 : i32
    %c0_i32_1 = arith.constant 0 : i32
    return %c0_i32, %c0_i32_0 : i32, i32
  }
  func.func @transform_12(%arg0: i32) -> (i32, i32) {
    %c0_i32 = arith.constant 0 : i32
    %c0_i32_0 = arith.constant 0 : i32
    %c0_i32_1 = arith.constant 0 : i32
    return %c0_i32, %c0_i32_0 : i32, i32
  }
  func.func @transform_13(%arg0: i32) -> (i32, i32) {
    %c0_i32 = arith.constant 0 : i32
    %c0_i32_0 = arith.constant 0 : i32
    %c0_i32_1 = arith.constant 0 : i32
    return %c0_i32, %c0_i32_0 : i32, i32
  }
  func.func @transform_14(%arg0: i32) -> (i32, i32) {
    %c0_i32 = arith.constant 0 : i32
    %c0_i32_0 = arith.constant 0 : i32
    %c0_i32_1 = arith.constant 0 : i32
    return %c0_i32, %c0_i32_0 : i32, i32
  }
  func.func @transform_15(%arg0: i32) -> (i32, i32) {
    %c0_i32 = arith.constant 0 : i32
    %c0_i32_0 = arith.constant 0 : i32
    %c0_i32_1 = arith.constant 0 : i32
    return %c0_i32, %c0_i32_0 : i32, i32
  }
  func.func @transform_16(%arg0: i32) -> (i32, i32) {
    %c0_i32 = arith.constant 0 : i32
    %c0_i32_0 = arith.constant 0 : i32
    %c0_i32_1 = arith.constant 0 : i32
    return %c0_i32, %c0_i32_0 : i32, i32
  }
  func.func @transform_17(%arg0: i32) -> (i32, i32) {
    %c0_i32 = arith.constant 0 : i32
    %c0_i32_0 = arith.constant 0 : i32
    %c0_i32_1 = arith.constant 0 : i32
    return %c0_i32, %c0_i32_0 : i32, i32
  }
  func.func @transform_18(%arg0: i32) -> (i32, i32, i32) {
    %c0_i32 = arith.constant 0 : i32
    %c0_i32_0 = arith.constant 0 : i32
    %c0_i32_1 = arith.constant 0 : i32
    return %arg0, %c0_i32, %c0_i32_0 : i32, i32, i32
  }
}

</mosaic_0001>

<llo_original>
// kernel: tpu_custom_call.1
$region0: #{tpu_custom_call.1}
  #allocation0 [shape = 'u32[]', space=smem, size = 0x4, offset = 0x4, fixed_abs, tag = 'smem constant byte address 0x4 - core index']
  #allocation1 [shape = 'u32[144,128]{1,0:T(1,128)}', space=vmem, size = 0x12000, scoped, tag = 'internal scratch']
  %s0 = inlined_call_operand.vmem [shape: bf16[2,8,128], index: 0, kind: input, shape index: {}]
  %s1 = inlined_call_operand.vmem [shape: bf16[2,1,128], index: 1, kind: input, shape index: {}]
  %s2 = inlined_call_operand.vmem [shape: f32[8,8,1], index: 2, kind: input, shape index: {}]
  %s3 = inlined_call_operand.vmem [shape: f32[8,1], index: 3, kind: input, shape index: {}]
  %s4 = inlined_call_operand.hbm [shape: bf16[128,384], index: 4, kind: input, shape index: {}]
  %s5 = inlined_call_operand.vmem [shape: f32[1,384], index: 5, kind: input, shape index: {}]
  %s6 = inlined_call_operand.vmem [shape: bf16[128,128], index: 6, kind: input, shape index: {}]
  %s7 = inlined_call_operand.vmem [shape: f32[1,128], index: 7, kind: input, shape index: {}]
  %s8 = inlined_call_operand.hbm [shape: bf16[128,128], index: 8, kind: input, shape index: {}]
  %s9 = inlined_call_operand.vmem [shape: f32[1,128], index: 9, kind: input, shape index: {}]
  %s10 = inlined_call_operand.hbm [shape: bf16[128,256], index: 10, kind: input, shape index: {}]
  %s11 = inlined_call_operand.vmem [shape: f32[1,256], index: 11, kind: input, shape index: {}]
  %s12 = inlined_call_operand.hbm [shape: bf16[128,128], index: 12, kind: input, shape index: {}]
  %s13 = inlined_call_operand.vmem [shape: f32[1,128], index: 13, kind: input, shape index: {}]
  %s14 = inlined_call_operand.hbm [shape: bf16[128,128], index: 14, kind: input, shape index: {}]
  %s15 = inlined_call_operand.vmem [shape: f32[1,128], index: 15, kind: input, shape index: {}]
  %s16 = inlined_call_operand.hbm [shape: bf16[128,128], index: 16, kind: input, shape index: {}]
  %s17 = inlined_call_operand.vmem [shape: f32[1,128], index: 17, kind: input, shape index: {}]
  %s18 = inlined_call_operand.hbm [shape: f32[2,1,128], index: 18, kind: output, shape index: {}]
  %s19 = sld [smem:[#allocation0]]
  $region106: #{tpu_custom_call.1} parent=0
    _
  %s21 = ssub.s32 1, %s19
  %s22 = scalar_select 0, %s21, %s19
  $region1: #{tpu_custom_call.1} parent=0
    #allocation2 [shape = 'u8[98304]{0}', space=vmem, size = 0x18000, scoped, tag = 'input window, operand 4, single buffered']
    #allocation3 [shape = 's32[1]{0}', space=sflag, size = 0x4, scoped, tag = 'scoped memory for tpu_custom_call.1']
    #allocation4 [shape = 's32[1]{0}', space=sflag, size = 0x4, scoped, tag = 'scoped memory for tpu_custom_call.1']
    #allocation5 [shape = 'u8[32768]{0}', space=vmem, size = 0x8000, scoped, tag = 'input window, operand 8, single buffered']
    #allocation6 [shape = 's32[1]{0}', space=sflag, size = 0x4, scoped, tag = 'scoped memory for tpu_custom_call.1']
    #allocation7 [shape = 'u8[65536]{0}', space=vmem, size = 0x10000, scoped, tag = 'input window, operand 10, single buffered']
    #allocation8 [shape = 'u8[32768]{0}', space=vmem, size = 0x8000, scoped, tag = 'input window, operand 12, single buffered']
    #allocation9 [shape = 's32[1]{0}', space=sflag, size = 0x4, scoped, tag = 'scoped memory for tpu_custom_call.1']
    #allocation10 [shape = 'u8[32768]{0}', space=vmem, size = 0x8000, scoped, tag = 'input window, operand 14, single buffered']
    #allocation11 [shape = 'u8[32768]{0}', space=vmem, size = 0x8000, scoped, tag = 'input window, operand 16, single buffered']
    #allocation12 [shape = 's32[1]{0}', space=sflag, size = 0x4, scoped, tag = 'scoped memory for tpu_custom_call.1']
    #allocation13 [shape = 'u8[1024]{0}', space=vmem, size = 0x400, scoped, tag = 'output window, operand 0, single buffered']
    %23 = vsyncpa [#allocation3], 0
    %24 = vsyncpa [#allocation6], 0
    %25 = vsyncpa [#allocation9], 0
    %26 = vsyncpa [#allocation12], 0
    %27 = vsyncpa [#allocation4], 0
    // Predicated region
    $region2: #{tpu_custom_call.1} parent=1 // pred_check
      _
    $region3: #{tpu_custom_call.1} parent=1 // pred_check_branch
      %29 = sbr.rel (0) target = $region5
    $region4: #{tpu_custom_call.1} parent=1 // pred_region
      _
    $region5: #{tpu_custom_call.1} parent=1 // pred_fallthru
      _
    // Predicated region
    $region6: #{tpu_custom_call.1} parent=1 // pred_check
      _
    $region7: #{tpu_custom_call.1} parent=1 // pred_check_branch
      %31 = sbr.rel (0) target = $region9
    $region8: #{tpu_custom_call.1} parent=1 // pred_region
      _
    $region9: #{tpu_custom_call.1} parent=1 // pred_fallthru
      _
    // Predicated region
    $region10: #{tpu_custom_call.1} parent=1 // pred_check
      _
    $region11: #{tpu_custom_call.1} parent=1 // pred_check_branch
      %33 = sbr.rel (0) target = $region13
    $region12: #{tpu_custom_call.1} parent=1 // pred_region
      _
    $region13: #{tpu_custom_call.1} parent=1 // pred_fallthru
      _
    // Predicated region
    $region14: #{tpu_custom_call.1} parent=1 // pred_check
      _
    $region15: #{tpu_custom_call.1} parent=1 // pred_check_branch
      %35 = sbr.rel (0) target = $region17
    $region16: #{tpu_custom_call.1} parent=1 // pred_region
      _
    $region17: #{tpu_custom_call.1} parent=1 // pred_fallthru
      _
    // Predicated region
    $region18: #{tpu_custom_call.1} parent=1 // pred_check
      _
    $region19: #{tpu_custom_call.1} parent=1 // pred_check_branch
      %37 = sbr.rel (0) target = $region21
    $region20: #{tpu_custom_call.1} parent=1 // pred_region
      %s39 = ssub.s32 3072, 3072
      %40 = vsyncadd [#allocation3], %s39
      %s41 = sshll.u32 [#allocation2], 4
      %s42 = int_to_ptr.vmem [resolvable:$true] %s41
      %47 = dma.hbm_to_vmem [thread:$0]  %s4, 3072, %s42, [#allocation3], 192, 192, 12
    $region21: #{tpu_custom_call.1} parent=1 // pred_fallthru
      _
    // Predicated region
    $region22: #{tpu_custom_call.1} parent=1 // pred_check
      _
    $region23: #{tpu_custom_call.1} parent=1 // pred_check_branch
      %49 = sbr.rel (0) target = $region25
    $region24: #{tpu_custom_call.1} parent=1 // pred_region
      _
    $region25: #{tpu_custom_call.1} parent=1 // pred_fallthru
      _
    // Predicated region
    $region26: #{tpu_custom_call.1} parent=1 // pred_check
      _
    $region27: #{tpu_custom_call.1} parent=1 // pred_check_branch
      %51 = sbr.rel (0) target = $region29
    $region28: #{tpu_custom_call.1} parent=1 // pred_region
      _
    $region29: #{tpu_custom_call.1} parent=1 // pred_fallthru
      _
    // Predicated region
    $region30: #{tpu_custom_call.1} parent=1 // pred_check
      _
    $region31: #{tpu_custom_call.1} parent=1 // pred_check_branch
      %53 = sbr.rel (0) target = $region33
    $region32: #{tpu_custom_call.1} parent=1 // pred_region
      _
    $region33: #{tpu_custom_call.1} parent=1 // pred_fallthru
      _
    // Predicated region
    $region34: #{tpu_custom_call.1} parent=1 // pred_check
      _
    $region35: #{tpu_custom_call.1} parent=1 // pred_check_branch
      %55 = sbr.rel (0) target = $region37
    $region36: #{tpu_custom_call.1} parent=1 // pred_region
      %s57 = ssub.s32 1024, 1024
      %58 = vsyncadd [#allocation6], %s57
      %s59 = sshll.u32 [#allocation5], 4
      %s60 = int_to_ptr.vmem [resolvable:$true] %s59
      %65 = dma.hbm_to_vmem [thread:$0]  %s8, 1024, %s60, [#allocation6], 64, 64, 4
    $region37: #{tpu_custom_call.1} parent=1 // pred_fallthru
      _
    // Predicated region
    $region38: #{tpu_custom_call.1} parent=1 // pred_check
      _
    $region39: #{tpu_custom_call.1} parent=1 // pred_check_branch
      %67 = sbr.rel (0) target = $region41
    $region40: #{tpu_custom_call.1} parent=1 // pred_region
      _
    $region41: #{tpu_custom_call.1} parent=1 // pred_fallthru
      _
    // Predicated region
    $region42: #{tpu_custom_call.1} parent=1 // pred_check
      _
    $region43: #{tpu_custom_call.1} parent=1 // pred_check_branch
      %69 = sbr.rel (0) target = $region45
    $region44: #{tpu_custom_call.1} parent=1 // pred_region
      %s71 = ssub.s32 2048, 2048
      %72 = vsyncadd [#allocation6], %s71
      %s73 = sshll.u32 [#allocation7], 4
      %s74 = int_to_ptr.vmem [resolvable:$true] %s73
      %79 = dma.hbm_to_vmem [thread:$0]  %s10, 2048, %s74, [#allocation6], 128, 128, 8
    $region45: #{tpu_custom_call.1} parent=1 // pred_fallthru
      _
    // Predicated region
    $region46: #{tpu_custom_call.1} parent=1 // pred_check
      _
    $region47: #{tpu_custom_call.1} parent=1 // pred_check_branch
      %81 = sbr.rel (0) target = $region49
    $region48: #{tpu_custom_call.1} parent=1 // pred_region
      _
    $region49: #{tpu_custom_call.1} parent=1 // pred_fallthru
      _
    // Predicated region
    $region50: #{tpu_custom_call.1} parent=1 // pred_check
      _
    $region51: #{tpu_custom_call.1} parent=1 // pred_check_branch
      %83 = sbr.rel (0) target = $region53
    $region52: #{tpu_custom_call.1} parent=1 // pred_region
      %s85 = ssub.s32 1024, 1024
      %86 = vsyncadd [#allocation9], %s85
      %s87 = sshll.u32 [#allocation8], 4
      %s88 = int_to_ptr.vmem [resolvable:$true] %s87
      %93 = dma.hbm_to_vmem [thread:$0]  %s12, 1024, %s88, [#allocation9], 64, 64, 4
    $region53: #{tpu_custom_call.1} parent=1 // pred_fallthru
      _
    // Predicated region
    $region54: #{tpu_custom_call.1} parent=1 // pred_check
      _
    $region55: #{tpu_custom_call.1} parent=1 // pred_check_branch
      %95 = sbr.rel (0) target = $region57
    $region56: #{tpu_custom_call.1} parent=1 // pred_region
      _
    $region57: #{tpu_custom_call.1} parent=1 // pred_fallthru
      _
    // Predicated region
    $region58: #{tpu_custom_call.1} parent=1 // pred_check
      _
    $region59: #{tpu_custom_call.1} parent=1 // pred_check_branch
      %97 = sbr.rel (0) target = $region61
    $region60: #{tpu_custom_call.1} parent=1 // pred_region
      %s99 = ssub.s32 1024, 1024
      %100 = vsyncadd [#allocation9], %s99
      %s101 = sshll.u32 [#allocation10], 4
      %s102 = int_to_ptr.vmem [resolvable:$true] %s101
      %107 = dma.hbm_to_vmem [thread:$0]  %s14, 1024, %s102, [#allocation9], 64, 64, 4
    $region61: #{tpu_custom_call.1} parent=1 // pred_fallthru
      _
    // Predicated region
    $region62: #{tpu_custom_call.1} parent=1 // pred_check
      _
    $region63: #{tpu_custom_call.1} parent=1 // pred_check_branch
      %109 = sbr.rel (0) target = $region65
    $region64: #{tpu_custom_call.1} parent=1 // pred_region
      _
    $region65: #{tpu_custom_call.1} parent=1 // pred_fallthru
      _
    // Predicated region
    $region66: #{tpu_custom_call.1} parent=1 // pred_check
      _
    $region67: #{tpu_custom_call.1} parent=1 // pred_check_branch
      %111 = sbr.rel (0) target = $region69
    $region68: #{tpu_custom_call.1} parent=1 // pred_region
      %s113 = ssub.s32 1024, 1024
      %114 = vsyncadd [#allocation12], %s113
      %s115 = sshll.u32 [#allocation11], 4
      %s116 = int_to_ptr.vmem [resolvable:$true] %s115
      %121 = dma.hbm_to_vmem [thread:$0]  %s16, 1024, %s116, [#allocation12], 64, 64, 4
    $region69: #{tpu_custom_call.1} parent=1 // pred_fallthru
      _
    // Predicated region
    $region70: #{tpu_custom_call.1} parent=1 // pred_check
      _
    $region71: #{tpu_custom_call.1} parent=1 // pred_check_branch
      %123 = sbr.rel (0) target = $region73
    $region72: #{tpu_custom_call.1} parent=1 // pred_region
      _
    $region73: #{tpu_custom_call.1} parent=1 // pred_fallthru
      _
    // Predicated region
    $region74: #{tpu_custom_call.1} parent=1 // pred_check
      _
    $region75: #{tpu_custom_call.1} parent=1 // pred_check_branch
      %125 = sbr.rel (0) target = $region77
    $region76: #{tpu_custom_call.1} parent=1 // pred_region
      %126 = dma.done [#allocation3], 3072
    $region77: #{tpu_custom_call.1} parent=1 // pred_fallthru
      _
    // Predicated region
    $region78: #{tpu_custom_call.1} parent=1 // pred_check
      _
    $region79: #{tpu_custom_call.1} parent=1 // pred_check_branch
      %128 = sbr.rel (0) target = $region81
    $region80: #{tpu_custom_call.1} parent=1 // pred_region
      %129 = dma.done [#allocation6], 1024
    $region81: #{tpu_custom_call.1} parent=1 // pred_fallthru
      _
    // Predicated region
    $region82: #{tpu_custom_call.1} parent=1 // pred_check
      _
    $region83: #{tpu_custom_call.1} parent=1 // pred_check_branch
      %131 = sbr.rel (0) target = $region85
    $region84: #{tpu_custom_call.1} parent=1 // pred_region
      %132 = dma.done [#allocation6], 2048
    $region85: #{tpu_custom_call.1} parent=1 // pred_fallthru
      _
    // Predicated region
    $region86: #{tpu_custom_call.1} parent=1 // pred_check
      _
    $region87: #{tpu_custom_call.1} parent=1 // pred_check_branch
      %134 = sbr.rel (0) target = $region89
    $region88: #{tpu_custom_call.1} parent=1 // pred_region
      %135 = dma.done [#allocation9], 1024
    $region89: #{tpu_custom_call.1} parent=1 // pred_fallthru
      _
    // Predicated region
    $region90: #{tpu_custom_call.1} parent=1 // pred_check
      _
    $region91: #{tpu_custom_call.1} parent=1 // pred_check_branch
      %137 = sbr.rel (0) target = $region93
    $region92: #{tpu_custom_call.1} parent=1 // pred_region
      %138 = dma.done [#allocation9], 1024
    $region93: #{tpu_custom_call.1} parent=1 // pred_fallthru
      _
    // Predicated region
    $region94: #{tpu_custom_call.1} parent=1 // pred_check
      _
    $region95: #{tpu_custom_call.1} parent=1 // pred_check_branch
      %140 = sbr.rel (0) target = $region97
    $region96: #{tpu_custom_call.1} parent=1 // pred_region
      %141 = dma.done [#allocation12], 1024
    $region97: #{tpu_custom_call.1} parent=1 // pred_fallthru
      _
    %v143 = vld [vmem:[%s2] sm:$0xff]
    %v144 = vld [vmem:[%s2 + $0x8] sm:$0xff]
    %v145 = vld [vmem:[%s2 + $0x10] sm:$0xff]
    %v146 = vld [vmem:[%s2 + $0x18] sm:$0xff]
    %v147 = vld [vmem:[%s2 + $0x20] sm:$0xff]
    %v148 = vld [vmem:[%s2 + $0x28] sm:$0xff]
    %v149 = vld [vmem:[%s2 + $0x30] sm:$0xff]
    %v150 = vld [vmem:[%s2 + $0x38] sm:$0xff]
    %v151 = vld [vmem:[%s3] sm:$0xff]
    %v152 = vld [vmem:[%s0] sm:$0xf]
    %v153 = vld [vmem:[%s0 + $0x4] sm:$0xf]
    %v154 = vld [vmem:[#allocation2] sm:$0xff]
    %v155 = vld [vmem:[#allocation2 + $0x8] sm:$0xf]
    %v156 = vld [vmem:[#allocation2 + $0xc] sm:$0xff]
    %v157 = vld [vmem:[#allocation2 + $0x14] sm:$0xf]
    %v158 = vld [vmem:[#allocation2 + $0x18] sm:$0xff]
    %v159 = vld [vmem:[#allocation2 + $0x20] sm:$0xf]
    %v160 = vld [vmem:[#allocation2 + $0x24] sm:$0xff]
    %v161 = vld [vmem:[#allocation2 + $0x2c] sm:$0xf]
    %v162 = vld [vmem:[#allocation2 + $0x30] sm:$0xff]
    %v163 = vld [vmem:[#allocation2 + $0x38] sm:$0xf]
    %v164 = vld [vmem:[#allocation2 + $0x3c] sm:$0xff]
    %v165 = vld [vmem:[#allocation2 + $0x44] sm:$0xf]
    %v166 = vld [vmem:[#allocation2 + $0x48] sm:$0xff]
    %v167 = vld [vmem:[#allocation2 + $0x50] sm:$0xf]
    %v168 = vld [vmem:[#allocation2 + $0x54] sm:$0xff]
    %v169 = vld [vmem:[#allocation2 + $0x5c] sm:$0xf]
    %v170 = vld [vmem:[#allocation2 + $0x60] sm:$0xff]
    %v171 = vld [vmem:[#allocation2 + $0x68] sm:$0xf]
    %v172 = vld [vmem:[#allocation2 + $0x6c] sm:$0xff]
    %v173 = vld [vmem:[#allocation2 + $0x74] sm:$0xf]
    %v174 = vld [vmem:[#allocation2 + $0x78] sm:$0xff]
    %v175 = vld [vmem:[#allocation2 + $0x80] sm:$0xf]
    %v176 = vld [vmem:[#allocation2 + $0x84] sm:$0xff]
    %v177 = vld [vmem:[#allocation2 + $0x8c] sm:$0xf]
    %v178 = vld [vmem:[#allocation2 + $0x90] sm:$0xff]
    %v179 = vld [vmem:[#allocation2 + $0x98] sm:$0xf]
    %v180 = vld [vmem:[#allocation2 + $0x9c] sm:$0xff]
    %v181 = vld [vmem:[#allocation2 + $0xa4] sm:$0xf]
    %v182 = vld [vmem:[#allocation2 + $0xa8] sm:$0xff]
    %v183 = vld [vmem:[#allocation2 + $0xb0] sm:$0xf]
    %v184 = vld [vmem:[#allocation2 + $0xb4] sm:$0xff]
    %v185 = vld [vmem:[#allocation2 + $0xbc] sm:$0xf]
    %v186 = vld [vmem:[%s5] sm:$0x7]
    %v188 = vlaneseq
    %v189 = vshrl.u32 %v188, 7
    %v190 = vsub.s32 0, %v189
    %v191 = vrot.slane %v186, %v190
    %v192 = vlaneseq
    %v193 = vshrl.u32 %v192, 7
    %v194 = vsub.s32 1, %v193
    %v195 = vrot.slane %v186, %v194
    %v196 = vlaneseq
    %v197 = vshrl.u32 %v196, 7
    %v198 = vsub.s32 2, %v197
    %v199 = vrot.slane %v186, %v198
    %v205 = vunpack.c.l.b16 %v152
    %v206 = vunpack.c.l.b16 %v153
    %v207 = vpack.c.b16 %v206, %v205
    %v241 = vunpack.c.l.b16 %v154
    %v242 = vunpack.c.h.b16 %v154
    %v243 = vunpack.c.l.b16 %v155
    %v244 = vunpack.c.l.b16 %v156
    %v245 = vunpack.c.h.b16 %v156
    %v246 = vunpack.c.l.b16 %v157
    %v247 = vunpack.c.l.b16 %v158
    %v248 = vunpack.c.h.b16 %v158
    %v249 = vunpack.c.l.b16 %v159
    %v250 = vunpack.c.l.b16 %v160
    %v251 = vunpack.c.h.b16 %v160
    %v252 = vunpack.c.l.b16 %v161
    %v253 = vunpack.c.l.b16 %v162
    %v254 = vunpack.c.h.b16 %v162
    %v255 = vunpack.c.l.b16 %v163
    %v256 = vunpack.c.l.b16 %v164
    %v257 = vunpack.c.h.b16 %v164
    %v258 = vunpack.c.l.b16 %v165
    %v259 = vunpack.c.l.b16 %v166
    %v260 = vunpack.c.h.b16 %v166
    %v261 = vunpack.c.l.b16 %v167
    %v262 = vunpack.c.l.b16 %v168
    %v263 = vunpack.c.h.b16 %v168
    %v264 = vunpack.c.l.b16 %v169
    %v265 = vunpack.c.l.b16 %v170
    %v266 = vunpack.c.h.b16 %v170
    %v267 = vunpack.c.l.b16 %v171
    %v268 = vunpack.c.l.b16 %v172
    %v269 = vunpack.c.h.b16 %v172
    %v270 = vunpack.c.l.b16 %v173
    %v271 = vunpack.c.l.b16 %v174
    %v272 = vunpack.c.h.b16 %v174
    %v273 = vunpack.c.l.b16 %v175
    %v274 = vunpack.c.l.b16 %v176
    %v275 = vunpack.c.h.b16 %v176
    %v276 = vunpack.c.l.b16 %v177
    %v277 = vunpack.c.l.b16 %v178
    %v278 = vunpack.c.h.b16 %v178
    %v279 = vunpack.c.l.b16 %v179
    %v280 = vunpack.c.l.b16 %v180
    %v281 = vunpack.c.h.b16 %v180
    %v282 = vunpack.c.l.b16 %v181
    %v283 = vunpack.c.l.b16 %v182
    %v284 = vunpack.c.h.b16 %v182
    %v285 = vunpack.c.l.b16 %v183
    %v286 = vunpack.c.l.b16 %v184
    %v287 = vunpack.c.h.b16 %v184
    %v288 = vunpack.c.l.b16 %v185
    %v289 = vpack.c.b16 %v244, %v241
    %v290 = vpack.c.b16 %v245, %v242
    %v291 = vpack.c.b16 %v246, %v243
    %v292 = vpack.c.b16 %v250, %v247
    %v293 = vpack.c.b16 %v251, %v248
    %v294 = vpack.c.b16 %v252, %v249
    %v295 = vpack.c.b16 %v256, %v253
    %v296 = vpack.c.b16 %v257, %v254
    %v297 = vpack.c.b16 %v258, %v255
    %v298 = vpack.c.b16 %v262, %v259
    %v299 = vpack.c.b16 %v263, %v260
    %v300 = vpack.c.b16 %v264, %v261
    %v301 = vpack.c.b16 %v268, %v265
    %v302 = vpack.c.b16 %v269, %v266
    %v303 = vpack.c.b16 %v270, %v267
    %v304 = vpack.c.b16 %v274, %v271
    %v305 = vpack.c.b16 %v275, %v272
    %v306 = vpack.c.b16 %v276, %v273
    %v307 = vpack.c.b16 %v280, %v277
    %v308 = vpack.c.b16 %v281, %v278
    %v309 = vpack.c.b16 %v282, %v279
    %v310 = vpack.c.b16 %v286, %v283
    %v311 = vpack.c.b16 %v287, %v284
    %v312 = vpack.c.b16 %v288, %v285
    %337 = vmatprep.subr.bf16.mxu0 %v311
    %338 = vmatpush1.bf16.msra.mxu0 %v310
    %339 = vmatprep.subr.bf16.mxu0 %v308
    %340 = vmatpush1.bf16.msra.mxu0 %v307
    %341 = vmatprep.subr.bf16.mxu0 %v305
    %342 = vmatpush1.bf16.msra.mxu0 %v304
    %343 = vmatprep.subr.bf16.mxu0 %v302
    %344 = vmatpush1.bf16.msra.mxu0 %v301
    %345 = vmatprep.subr.bf16.mxu0 %v299
    %346 = vmatpush1.bf16.msra.mxu0 %v298
    %347 = vmatprep.subr.bf16.mxu0 %v296
    %348 = vmatpush1.bf16.msra.mxu0 %v295
    %349 = vmatprep.subr.bf16.mxu0 %v293
    %350 = vmatpush1.bf16.msra.mxu0 %v292
    %351 = vmatprep.subr.bf16.mxu0 %v290
    %352 = vmatpush1.bf16.msra.mxu0 %v289
    %353 = vmatprep.subr.bf16.mxu0 0
    %354 = vmatpush2.bf16.msra.mxu0 0
    %355 = vmatprep.subr.bf16.mxu0 0
    %356 = vmatpush2.bf16.msra.mxu0 0
    %357 = vmatprep.subr.bf16.mxu0 0
    %358 = vmatpush2.bf16.msra.mxu0 0
    %359 = vmatprep.subr.bf16.mxu0 0
    %360 = vmatpush2.bf16.msra.mxu0 0
    %361 = vmatprep.subr.bf16.mxu0 0
    %362 = vmatpush2.bf16.msra.mxu0 0
    %363 = vmatprep.subr.bf16.mxu0 0
    %364 = vmatpush2.bf16.msra.mxu0 0
    %365 = vmatprep.subr.bf16.mxu0 0
    %366 = vmatpush2.bf16.msra.mxu0 0
    %367 = vmatprep.subr.bf16.mxu0 0
    %368 = vmatpush2.bf16.msra.mxu0 0
    %369 = vmatprep.mubr.bf16.mxu0 0
    %370 = vmatmul.mubr.bf16.gmra.mxu0 %v207
    %v371 = vpop.f32.mrf.mxu0
    %v372 = vadd.f32 %v191, %v371
    %v373 = vpop.f32.mrf.mxu0
    %v374 = vadd.f32 %v195, %v373
    %v375 = vpop.f32.mrf.mxu0
    %v376 = vadd.f32 %v191, %v375
    %v377 = vpop.f32.mrf.mxu0
    %v378 = vadd.f32 %v195, %v377
    %379 = vdwg.mxu0
    %380 = vmatprep.subr.bf16.mxu0 0
    %381 = vmatpush1.bf16.msra.mxu0 %v312
    %382 = vmatprep.subr.bf16.mxu0 0
    %383 = vmatpush1.bf16.msra.mxu0 %v309
    %384 = vmatprep.subr.bf16.mxu0 0
    %385 = vmatpush1.bf16.msra.mxu0 %v306
    %386 = vmatprep.subr.bf16.mxu0 0
    %387 = vmatpush1.bf16.msra.mxu0 %v303
    %388 = vmatprep.subr.bf16.mxu0 0
    %389 = vmatpush1.bf16.msra.mxu0 %v300
    %390 = vmatprep.subr.bf16.mxu0 0
    %391 = vmatpush1.bf16.msra.mxu0 %v297
    %392 = vmatprep.subr.bf16.mxu0 0
    %393 = vmatpush1.bf16.msra.mxu0 %v294
    %394 = vmatprep.subr.bf16.mxu0 0
    %395 = vmatpush1.bf16.msra.mxu0 %v291
    %396 = vmatprep.subr.bf16.mxu0 0
    %397 = vmatpush2.bf16.msra.mxu0 0
    %398 = vmatprep.subr.bf16.mxu0 0
    %399 = vmatpush2.bf16.msra.mxu0 0
    %400 = vmatprep.subr.bf16.mxu0 0
    %401 = vmatpush2.bf16.msra.mxu0 0
    %402 = vmatprep.subr.bf16.mxu0 0
    %403 = vmatpush2.bf16.msra.mxu0 0
    %404 = vmatprep.subr.bf16.mxu0 0
    %405 = vmatpush2.bf16.msra.mxu0 0
    %406 = vmatprep.subr.bf16.mxu0 0
    %407 = vmatpush2.bf16.msra.mxu0 0
    %408 = vmatprep.subr.bf16.mxu0 0
    %409 = vmatpush2.bf16.msra.mxu0 0
    %410 = vmatprep.subr.bf16.mxu0 0
    %411 = vmatpush2.bf16.msra.mxu0 0
    %412 = vmatprep.mubr.bf16.mxu0 0
    %413 = vmatmul.mubr.bf16.gmra.mxu0 %v207
    %v414 = vpop.f32.mrf.mxu0
    %v415 = vadd.f32 %v199, %v414
    %v416 = vpop.f32.mrf.mxu0
    %v417 = vpop.f32.mrf.mxu0
    %v418 = vadd.f32 %v199, %v417
    %v419 = vpop.f32.mrf.mxu0
    %420 = vdwg.mxu0
    %v421 = vmul.f32 %v372, 0.25
    %v422 = vmul.f32 %v376, 0.25
    %v425 = vcombine.high %v421, %v421
    %v427 = vunpack.c.l.s4 1966171168
    %v428 = vunpack.c.0.s8 %v427
    %v429 = vlaneseq
    %v430 = vshrl.u32 %v429, 7
    %v431 = vsub.s32 %v428, %v430
    %v432 = vrot.slane %v421, %v431
    %v434 = vunpack.c.l.s4 1966171168
    %v435 = vunpack.c.0.s8 %v434
    %v436 = vlaneseq
    %v437 = vshrl.u32 %v436, 7
    %v438 = vsub.s32 %v435, %v437
    %v439 = vrot.slane %v425, %v438
    %v440 = vcombine.high %v432, %v432
    %v441 = vcombine.high %v439, %v439
    %v443 = vunpack.c.l.s4 1966171168
    %v444 = vunpack.c.0.s8 %v443
    %v445 = vlaneseq
    %v446 = vshrl.u32 %v445, 7
    %v447 = vsub.s32 %v444, %v446
    %v448 = vrot.slane %v432, %v447
    %v450 = vunpack.c.l.s4 1966171168
    %v451 = vunpack.c.0.s8 %v450
    %v452 = vlaneseq
    %v453 = vshrl.u32 %v452, 7
    %v454 = vsub.s32 %v451, %v453
    %v455 = vrot.slane %v439, %v454
    %v457 = vunpack.c.l.s4 1966171168
    %v458 = vunpack.c.0.s8 %v457
    %v459 = vlaneseq
    %v460 = vshrl.u32 %v459, 7
    %v461 = vsub.s32 %v458, %v460
    %v462 = vrot.slane %v440, %v461
    %v464 = vunpack.c.l.s4 1966171168
    %v465 = vunpack.c.0.s8 %v464
    %v466 = vlaneseq
    %v467 = vshrl.u32 %v466, 7
    %v468 = vsub.s32 %v465, %v467
    %v469 = vrot.slane %v441, %v468
    %v470 = vcombine.high %v448, %v448
    %v471 = vcombine.high %v455, %v455
    %v472 = vcombine.high %v462, %v462
    %v473 = vcombine.high %v469, %v469
    %v474 = vcombine.high %v422, %v422
    %v476 = vunpack.c.l.s4 1966171168
    %v477 = vunpack.c.0.s8 %v476
    %v478 = vlaneseq
    %v479 = vshrl.u32 %v478, 7
    %v480 = vsub.s32 %v477, %v479
    %v481 = vrot.slane %v422, %v480
    %v483 = vunpack.c.l.s4 1966171168
    %v484 = vunpack.c.0.s8 %v483
    %v485 = vlaneseq
    %v486 = vshrl.u32 %v485, 7
    %v487 = vsub.s32 %v484, %v486
    %v488 = vrot.slane %v474, %v487
    %v489 = vcombine.high %v481, %v481
    %v490 = vcombine.high %v488, %v488
    %v492 = vunpack.c.l.s4 1966171168
    %v493 = vunpack.c.0.s8 %v492
    %v494 = vlaneseq
    %v495 = vshrl.u32 %v494, 7
    %v496 = vsub.s32 %v493, %v495
    %v497 = vrot.slane %v481, %v496
    %v499 = vunpack.c.l.s4 1966171168
    %v500 = vunpack.c.0.s8 %v499
    %v501 = vlaneseq
    %v502 = vshrl.u32 %v501, 7
    %v503 = vsub.s32 %v500, %v502
    %v504 = vrot.slane %v488, %v503
    %v506 = vunpack.c.l.s4 1966171168
    %v507 = vunpack.c.0.s8 %v506
    %v508 = vlaneseq
    %v509 = vshrl.u32 %v508, 7
    %v510 = vsub.s32 %v507, %v509
    %v511 = vrot.slane %v489, %v510
    %v513 = vunpack.c.l.s4 1966171168
    %v514 = vunpack.c.0.s8 %v513
    %v515 = vlaneseq
    %v516 = vshrl.u32 %v515, 7
    %v517 = vsub.s32 %v514, %v516
    %v518 = vrot.slane %v490, %v517
    %v519 = vcombine.high %v497, %v497
    %v520 = vcombine.high %v504, %v504
    %v521 = vcombine.high %v511, %v511
    %v522 = vcombine.high %v518, %v518
    %v523 = vlaneseq
    %v524 = vshrl.u32 %v523, 7
    %v525 = vsub.s32 0, %v524
    %v526 = vrot.slane %v448, %v525
    %v527 = vlaneseq
    %v528 = vshrl.u32 %v527, 7
    %v529 = vsub.s32 0, %v528
    %v530 = vrot.slane %v462, %v529
    %v531 = vlaneseq
    %v532 = vshrl.u32 %v531, 7
    %v533 = vsub.s32 0, %v532
    %v534 = vrot.slane %v470, %v533
    %v535 = vlaneseq
    %v536 = vshrl.u32 %v535, 7
    %v537 = vsub.s32 0, %v536
    %v538 = vrot.slane %v472, %v537
    %v539 = vlaneseq
    %v540 = vshrl.u32 %v539, 7
    %v541 = vsub.s32 0, %v540
    %v542 = vrot.slane %v455, %v541
    %v543 = vlaneseq
    %v544 = vshrl.u32 %v543, 7
    %v545 = vsub.s32 0, %v544
    %v546 = vrot.slane %v469, %v545
    %v547 = vlaneseq
    %v548 = vshrl.u32 %v547, 7
    %v549 = vsub.s32 0, %v548
    %v550 = vrot.slane %v471, %v549
    %v551 = vlaneseq
    %v552 = vshrl.u32 %v551, 7
    %v553 = vsub.s32 0, %v552
    %v554 = vrot.slane %v473, %v553
    %v555 = vlaneseq
    %v556 = vshrl.u32 %v555, 7
    %v557 = vsub.s32 0, %v556
    %v558 = vrot.slane %v497, %v557
    %v559 = vlaneseq
    %v560 = vshrl.u32 %v559, 7
    %v561 = vsub.s32 0, %v560
    %v562 = vrot.slane %v511, %v561
    %v563 = vlaneseq
    %v564 = vshrl.u32 %v563, 7
    %v565 = vsub.s32 0, %v564
    %v566 = vrot.slane %v519, %v565
    %v567 = vlaneseq
    %v568 = vshrl.u32 %v567, 7
    %v569 = vsub.s32 0, %v568
    %v570 = vrot.slane %v521, %v569
    %v571 = vlaneseq
    %v572 = vshrl.u32 %v571, 7
    %v573 = vsub.s32 0, %v572
    %v574 = vrot.slane %v504, %v573
    %v575 = vlaneseq
    %v576 = vshrl.u32 %v575, 7
    %v577 = vsub.s32 0, %v576
    %v578 = vrot.slane %v518, %v577
    %v579 = vlaneseq
    %v580 = vshrl.u32 %v579, 7
    %v581 = vsub.s32 0, %v580
    %v582 = vrot.slane %v520, %v581
    %v583 = vlaneseq
    %v584 = vshrl.u32 %v583, 7
    %v585 = vsub.s32 0, %v584
    %v586 = vrot.slane %v522, %v585
    %v603 = vmul.f32 %v526, %v374
    %v604 = vmul.f32 %v530, %v374
    %v605 = vmul.f32 %v534, %v374
    %v606 = vmul.f32 %v538, %v374
    %v607 = vmul.f32 %v542, %v374
    %v608 = vmul.f32 %v546, %v374
    %v609 = vmul.f32 %v550, %v374
    %v610 = vmul.f32 %v554, %v374
    %v611 = vmul.f32 %v558, %v378
    %v612 = vmul.f32 %v562, %v378
    %v613 = vmul.f32 %v566, %v378
    %v614 = vmul.f32 %v570, %v378
    %v615 = vmul.f32 %v574, %v378
    %v616 = vmul.f32 %v578, %v378
    %v617 = vmul.f32 %v582, %v378
    %v618 = vmul.f32 %v586, %v378
    %619 = vrot.lane.b32.xlu0 %v603, 8
    %v620 = vpop.permute.xlu0 %619
    %621 = vrot.lane.b32.xlu0 %v604, 8
    %v622 = vpop.permute.xlu0 %621
    %623 = vrot.lane.b32.xlu0 %v605, 8
    %v624 = vpop.permute.xlu0 %623
    %625 = vrot.lane.b32.xlu0 %v606, 8
    %v626 = vpop.permute.xlu0 %625
    %627 = vrot.lane.b32.xlu0 %v607, 8
    %v628 = vpop.permute.xlu0 %627
    %629 = vrot.lane.b32.xlu0 %v608, 8
    %v630 = vpop.permute.xlu0 %629
    %631 = vrot.lane.b32.xlu0 %v609, 8
    %v632 = vpop.permute.xlu0 %631
    %633 = vrot.lane.b32.xlu0 %v610, 8
    %v634 = vpop.permute.xlu0 %633
    %635 = vrot.lane.b32.xlu0 %v611, 8
    %v636 = vpop.permute.xlu0 %635
    %637 = vrot.lane.b32.xlu0 %v612, 8
    %v638 = vpop.permute.xlu0 %637
    %639 = vrot.lane.b32.xlu0 %v613, 8
    %v640 = vpop.permute.xlu0 %639
    %641 = vrot.lane.b32.xlu0 %v614, 8
    %v642 = vpop.permute.xlu0 %641
    %643 = vrot.lane.b32.xlu0 %v615, 8
    %v644 = vpop.permute.xlu0 %643
    %645 = vrot.lane.b32.xlu0 %v616, 8
    %v646 = vpop.permute.xlu0 %645
    %647 = vrot.lane.b32.xlu0 %v617, 8
    %v648 = vpop.permute.xlu0 %647
    %649 = vrot.lane.b32.xlu0 %v618, 8
    %v650 = vpop.permute.xlu0 %649
    %v651 = vadd.f32 %v603, %v620
    %v652 = vadd.f32 %v604, %v622
    %v653 = vadd.f32 %v605, %v624
    %v654 = vadd.f32 %v606, %v626
    %v655 = vadd.f32 %v607, %v628
    %v656 = vadd.f32 %v608, %v630
    %v657 = vadd.f32 %v609, %v632
    %v658 = vadd.f32 %v610, %v634
    %v659 = vadd.f32 %v611, %v636
    %v660 = vadd.f32 %v612, %v638
    %v661 = vadd.f32 %v613, %v640
    %v662 = vadd.f32 %v614, %v642
    %v663 = vadd.f32 %v615, %v644
    %v664 = vadd.f32 %v616, %v646
    %v665 = vadd.f32 %v617, %v648
    %v666 = vadd.f32 %v618, %v650
    %667 = vrot.lane.b32.xlu0 %v651, 16
    %v668 = vpop.permute.xlu0 %667
    %669 = vrot.lane.b32.xlu0 %v652, 16
    %v670 = vpop.permute.xlu0 %669
    %671 = vrot.lane.b32.xlu0 %v653, 16
    %v672 = vpop.permute.xlu0 %671
    %673 = vrot.lane.b32.xlu0 %v654, 16
    %v674 = vpop.permute.xlu0 %673
    %675 = vrot.lane.b32.xlu0 %v655, 16
    %v676 = vpop.permute.xlu0 %675
    %677 = vrot.lane.b32.xlu0 %v656, 16
    %v678 = vpop.permute.xlu0 %677
    %679 = vrot.lane.b32.xlu0 %v657, 16
    %v680 = vpop.permute.xlu0 %679
    %681 = vrot.lane.b32.xlu0 %v658, 16
    %v682 = vpop.permute.xlu0 %681
    %683 = vrot.lane.b32.xlu0 %v659, 16
    %v684 = vpop.permute.xlu0 %683
    %685 = vrot.lane.b32.xlu0 %v660, 16
    %v686 = vpop.permute.xlu0 %685
    %687 = vrot.lane.b32.xlu0 %v661, 16
    %v688 = vpop.permute.xlu0 %687
    %689 = vrot.lane.b32.xlu0 %v662, 16
    %v690 = vpop.permute.xlu0 %689
    %691 = vrot.lane.b32.xlu0 %v663, 16
    %v692 = vpop.permute.xlu0 %691
    %693 = vrot.lane.b32.xlu0 %v664, 16
    %v694 = vpop.permute.xlu0 %693
    %695 = vrot.lane.b32.xlu0 %v665, 16
    %v696 = vpop.permute.xlu0 %695
    %697 = vrot.lane.b32.xlu0 %v666, 16
    %v698 = vpop.permute.xlu0 %697
    %v699 = vadd.f32 %v651, %v668
    %v700 = vadd.f32 %v652, %v670
    %v701 = vadd.f32 %v653, %v672
    %v702 = vadd.f32 %v654, %v674
    %v703 = vadd.f32 %v655, %v676
    %v704 = vadd.f32 %v656, %v678
    %v705 = vadd.f32 %v657, %v680
    %v706 = vadd.f32 %v658, %v682
    %v707 = vadd.f32 %v659, %v684
    %v708 = vadd.f32 %v660, %v686
    %v709 = vadd.f32 %v661, %v688
    %v710 = vadd.f32 %v662, %v690
    %v711 = vadd.f32 %v663, %v692
    %v712 = vadd.f32 %v664, %v694
    %v713 = vadd.f32 %v665, %v696
    %v714 = vadd.f32 %v666, %v698
    %715 = vrot.lane.b32.xlu0 %v699, 32
    %v716 = vpop.permute.xlu0 %715
    %717 = vrot.lane.b32.xlu0 %v700, 32
    %v718 = vpop.permute.xlu0 %717
    %719 = vrot.lane.b32.xlu0 %v701, 32
    %v720 = vpop.permute.xlu0 %719
    %721 = vrot.lane.b32.xlu0 %v702, 32
    %v722 = vpop.permute.xlu0 %721
    %723 = vrot.lane.b32.xlu0 %v703, 32
    %v724 = vpop.permute.xlu0 %723
    %725 = vrot.lane.b32.xlu0 %v704, 32
    %v726 = vpop.permute.xlu0 %725
    %727 = vrot.lane.b32.xlu0 %v705, 32
    %v728 = vpop.permute.xlu0 %727
    %729 = vrot.lane.b32.xlu0 %v706, 32
    %v730 = vpop.permute.xlu0 %729
    %731 = vrot.lane.b32.xlu0 %v707, 32
    %v732 = vpop.permute.xlu0 %731
    %733 = vrot.lane.b32.xlu0 %v708, 32
    %v734 = vpop.permute.xlu0 %733
    %735 = vrot.lane.b32.xlu0 %v709, 32
    %v736 = vpop.permute.xlu0 %735
    %737 = vrot.lane.b32.xlu0 %v710, 32
    %v738 = vpop.permute.xlu0 %737
    %739 = vrot.lane.b32.xlu0 %v711, 32
    %v740 = vpop.permute.xlu0 %739
    %741 = vrot.lane.b32.xlu0 %v712, 32
    %v742 = vpop.permute.xlu0 %741
    %743 = vrot.lane.b32.xlu0 %v713, 32
    %v744 = vpop.permute.xlu0 %743
    %745 = vrot.lane.b32.xlu0 %v714, 32
    %v746 = vpop.permute.xlu0 %745
    %v747 = vadd.f32 %v699, %v716
    %v748 = vadd.f32 %v700, %v718
    %v749 = vadd.f32 %v701, %v720
    %v750 = vadd.f32 %v702, %v722
    %v751 = vadd.f32 %v703, %v724
    %v752 = vadd.f32 %v704, %v726
    %v753 = vadd.f32 %v705, %v728
    %v754 = vadd.f32 %v706, %v730
    %v755 = vadd.f32 %v707, %v732
    %v756 = vadd.f32 %v708, %v734
    %v757 = vadd.f32 %v709, %v736
    %v758 = vadd.f32 %v710, %v738
    %v759 = vadd.f32 %v711, %v740
    %v760 = vadd.f32 %v712, %v742
    %v761 = vadd.f32 %v713, %v744
    %v762 = vadd.f32 %v714, %v746
    %763 = vrot.lane.b32.xlu0 %v747, 64
    %v764 = vpop.permute.xlu0 %763
    %765 = vrot.lane.b32.xlu0 %v748, 64
    %v766 = vpop.permute.xlu0 %765
    %767 = vrot.lane.b32.xlu0 %v749, 64
    %v768 = vpop.permute.xlu0 %767
    %769 = vrot.lane.b32.xlu0 %v750, 64
    %v770 = vpop.permute.xlu0 %769
    %771 = vrot.lane.b32.xlu0 %v751, 64
    %v772 = vpop.permute.xlu0 %771
    %773 = vrot.lane.b32.xlu0 %v752, 64
    %v774 = vpop.permute.xlu0 %773
    %775 = vrot.lane.b32.xlu0 %v753, 64
    %v776 = vpop.permute.xlu0 %775
    %777 = vrot.lane.b32.xlu0 %v754, 64
    %v778 = vpop.permute.xlu0 %777
    %779 = vrot.lane.b32.xlu0 %v755, 64
    %v780 = vpop.permute.xlu0 %779
    %781 = vrot.lane.b32.xlu0 %v756, 64
    %v782 = vpop.permute.xlu0 %781
    %783 = vrot.lane.b32.xlu0 %v757, 64
    %v784 = vpop.permute.xlu0 %783
    %785 = vrot.lane.b32.xlu0 %v758, 64
    %v786 = vpop.permute.xlu0 %785
    %787 = vrot.lane.b32.xlu0 %v759, 64
    %v788 = vpop.permute.xlu0 %787
    %789 = vrot.lane.b32.xlu0 %v760, 64
    %v790 = vpop.permute.xlu0 %789
    %791 = vrot.lane.b32.xlu0 %v761, 64
    %v792 = vpop.permute.xlu0 %791
    %793 = vrot.lane.b32.xlu0 %v762, 64
    %v794 = vpop.permute.xlu0 %793
    %v795 = vadd.f32 %v747, %v764
    %v796 = vadd.f32 %v748, %v766
    %v797 = vadd.f32 %v749, %v768
    %v798 = vadd.f32 %v750, %v770
    %v799 = vadd.f32 %v751, %v772
    %v800 = vadd.f32 %v752, %v774
    %v801 = vadd.f32 %v753, %v776
    %v802 = vadd.f32 %v754, %v778
    %v803 = vadd.f32 %v755, %v780
    %v804 = vadd.f32 %v756, %v782
    %v805 = vadd.f32 %v757, %v784
    %v806 = vadd.f32 %v758, %v786
    %v807 = vadd.f32 %v759, %v788
    %v808 = vadd.f32 %v760, %v790
    %v809 = vadd.f32 %v761, %v792
    %v810 = vadd.f32 %v762, %v794
    %812 = vset.pattern.permute.xlu0 0
    %813 = vperm.xlu0 %812, %v143
    %v814 = vpop.permute.xlu0 %813
    %817 = vset.pattern.permute.xlu0 0
    %818 = vperm.xlu0 %817, %v144
    %v819 = vpop.permute.xlu0 %818
    %822 = vset.pattern.permute.xlu0 0
    %823 = vperm.xlu0 %822, %v145
    %v824 = vpop.permute.xlu0 %823
    %827 = vset.pattern.permute.xlu0 0
    %828 = vperm.xlu0 %827, %v146
    %v829 = vpop.permute.xlu0 %828
    %832 = vset.pattern.permute.xlu0 0
    %833 = vperm.xlu0 %832, %v147
    %v834 = vpop.permute.xlu0 %833
    %837 = vset.pattern.permute.xlu0 0
    %838 = vperm.xlu0 %837, %v148
    %v839 = vpop.permute.xlu0 %838
    %842 = vset.pattern.permute.xlu0 0
    %843 = vperm.xlu0 %842, %v149
    %v844 = vpop.permute.xlu0 %843
    %847 = vset.pattern.permute.xlu0 0
    %848 = vperm.xlu0 %847, %v150
    %v849 = vpop.permute.xlu0 %848
    %v851 = vadd.f32 %v795, %v814
    %v852 = vadd.f32 %v796, %v819
    %v853 = vadd.f32 %v797, %v824
    %v854 = vadd.f32 %v798, %v829
    %v855 = vadd.f32 %v799, %v834
    %v856 = vadd.f32 %v800, %v839
    %v857 = vadd.f32 %v801, %v844
    %v858 = vadd.f32 %v802, %v849
    %v859 = vadd.f32 %v803, %v814
    %v860 = vadd.f32 %v804, %v819
    %v861 = vadd.f32 %v805, %v824
    %v862 = vadd.f32 %v806, %v829
    %v863 = vadd.f32 %v807, %v834
    %v864 = vadd.f32 %v808, %v839
    %v865 = vadd.f32 %v809, %v844
    %v866 = vadd.f32 %v810, %v849
    %v867 = vrot.slane %v851, 4
    %v868 = vmax.f32 %v851, %v867
    %v869 = vrot.slane %v868, 2
    %v870 = vmax.f32 %v868, %v869
    %v871 = vrot.slane %v870, 1
    %v872 = vmax.f32 %v870, %v871
    %v873 = vrot.slane %v852, 4
    %v874 = vmax.f32 %v852, %v873
    %v875 = vrot.slane %v874, 2
    %v876 = vmax.f32 %v874, %v875
    %v877 = vrot.slane %v876, 1
    %v878 = vmax.f32 %v876, %v877
    %v879 = vrot.slane %v853, 4
    %v880 = vmax.f32 %v853, %v879
    %v881 = vrot.slane %v880, 2
    %v882 = vmax.f32 %v880, %v881
    %v883 = vrot.slane %v882, 1
    %v884 = vmax.f32 %v882, %v883
    %v885 = vrot.slane %v854, 4
    %v886 = vmax.f32 %v854, %v885
    %v887 = vrot.slane %v886, 2
    %v888 = vmax.f32 %v886, %v887
    %v889 = vrot.slane %v888, 1
    %v890 = vmax.f32 %v888, %v889
    %v891 = vrot.slane %v855, 4
    %v892 = vmax.f32 %v855, %v891
    %v893 = vrot.slane %v892, 2
    %v894 = vmax.f32 %v892, %v893
    %v895 = vrot.slane %v894, 1
    %v896 = vmax.f32 %v894, %v895
    %v897 = vrot.slane %v856, 4
    %v898 = vmax.f32 %v856, %v897
    %v899 = vrot.slane %v898, 2
    %v900 = vmax.f32 %v898, %v899
    %v901 = vrot.slane %v900, 1
    %v902 = vmax.f32 %v900, %v901
    %v903 = vrot.slane %v857, 4
    %v904 = vmax.f32 %v857, %v903
    %v905 = vrot.slane %v904, 2
    %v906 = vmax.f32 %v904, %v905
    %v907 = vrot.slane %v906, 1
    %v908 = vmax.f32 %v906, %v907
    %v909 = vrot.slane %v858, 4
    %v910 = vmax.f32 %v858, %v909
    %v911 = vrot.slane %v910, 2
    %v912 = vmax.f32 %v910, %v911
    %v913 = vrot.slane %v912, 1
    %v914 = vmax.f32 %v912, %v913
    %v915 = vrot.slane %v859, 4
    %v916 = vmax.f32 %v859, %v915
    %v917 = vrot.slane %v916, 2
    %v918 = vmax.f32 %v916, %v917
    %v919 = vrot.slane %v918, 1
    %v920 = vmax.f32 %v918, %v919
    %v921 = vrot.slane %v860, 4
    %v922 = vmax.f32 %v860, %v921
    %v923 = vrot.slane %v922, 2
    %v924 = vmax.f32 %v922, %v923
    %v925 = vrot.slane %v924, 1
    %v926 = vmax.f32 %v924, %v925
    %v927 = vrot.slane %v861, 4
    %v928 = vmax.f32 %v861, %v927
    %v929 = vrot.slane %v928, 2
    %v930 = vmax.f32 %v928, %v929
    %v931 = vrot.slane %v930, 1
    %v932 = vmax.f32 %v930, %v931
    %v933 = vrot.slane %v862, 4
    %v934 = vmax.f32 %v862, %v933
    %v935 = vrot.slane %v934, 2
    %v936 = vmax.f32 %v934, %v935
    %v937 = vrot.slane %v936, 1
    %v938 = vmax.f32 %v936, %v937
    %v939 = vrot.slane %v863, 4
    %v940 = vmax.f32 %v863, %v939
    %v941 = vrot.slane %v940, 2
    %v942 = vmax.f32 %v940, %v941
    %v943 = vrot.slane %v942, 1
    %v944 = vmax.f32 %v942, %v943
    %v945 = vrot.slane %v864, 4
    %v946 = vmax.f32 %v864, %v945
    %v947 = vrot.slane %v946, 2
    %v948 = vmax.f32 %v946, %v947
    %v949 = vrot.slane %v948, 1
    %v950 = vmax.f32 %v948, %v949
    %v951 = vrot.slane %v865, 4
    %v952 = vmax.f32 %v865, %v951
    %v953 = vrot.slane %v952, 2
    %v954 = vmax.f32 %v952, %v953
    %v955 = vrot.slane %v954, 1
    %v956 = vmax.f32 %v954, %v955
    %v957 = vrot.slane %v866, 4
    %v958 = vmax.f32 %v866, %v957
    %v959 = vrot.slane %v958, 2
    %v960 = vmax.f32 %v958, %v959
    %v961 = vrot.slane %v960, 1
    %v962 = vmax.f32 %v960, %v961
    %v963 = vsub.f32 %v851, %v872
    %v964 = vsub.f32 %v852, %v878
    %v965 = vsub.f32 %v853, %v884
    %v966 = vsub.f32 %v854, %v890
    %v967 = vsub.f32 %v855, %v896
    %v968 = vsub.f32 %v856, %v902
    %v969 = vsub.f32 %v857, %v908
    %v970 = vsub.f32 %v858, %v914
    %v971 = vsub.f32 %v859, %v920
    %v972 = vsub.f32 %v860, %v926
    %v973 = vsub.f32 %v861, %v932
    %v974 = vsub.f32 %v862, %v938
    %v975 = vsub.f32 %v863, %v944
    %v976 = vsub.f32 %v864, %v950
    %v977 = vsub.f32 %v865, %v956
    %v978 = vsub.f32 %v866, %v962
    %v979 = vmul.f32 %v963, 1.442695
    %v980 = vpow.pop %v979
    %v981 = vmul.f32 %v964, 1.442695
    %v982 = vpow.pop %v981
    %v983 = vmul.f32 %v965, 1.442695
    %v984 = vpow.pop %v983
    %v985 = vmul.f32 %v966, 1.442695
    %v986 = vpow.pop %v985
    %v987 = vmul.f32 %v967, 1.442695
    %v988 = vpow.pop %v987
    %v989 = vmul.f32 %v968, 1.442695
    %v990 = vpow.pop %v989
    %v991 = vmul.f32 %v969, 1.442695
    %v992 = vpow.pop %v991
    %v993 = vmul.f32 %v970, 1.442695
    %v994 = vpow.pop %v993
    %v995 = vmul.f32 %v971, 1.442695
    %v996 = vpow.pop %v995
    %v997 = vmul.f32 %v972, 1.442695
    %v998 = vpow.pop %v997
    %v999 = vmul.f32 %v973, 1.442695
    %v1000 = vpow.pop %v999
    %v1001 = vmul.f32 %v974, 1.442695
    %v1002 = vpow.pop %v1001
    %v1003 = vmul.f32 %v975, 1.442695
    %v1004 = vpow.pop %v1003
    %v1005 = vmul.f32 %v976, 1.442695
    %v1006 = vpow.pop %v1005
    %v1007 = vmul.f32 %v977, 1.442695
    %v1008 = vpow.pop %v1007
    %v1009 = vmul.f32 %v978, 1.442695
    %v1010 = vpow.pop %v1009
    %v1011 = vrot.slane %v980, 4
    %v1012 = vadd.f32 %v980, %v1011
    %v1013 = vrot.slane %v1012, 2
    %v1014 = vadd.f32 %v1012, %v1013
    %v1015 = vrot.slane %v1014, 1
    %v1016 = vadd.f32 %v1014, %v1015
    %v1017 = vrot.slane %v982, 4
    %v1018 = vadd.f32 %v982, %v1017
    %v1019 = vrot.slane %v1018, 2
    %v1020 = vadd.f32 %v1018, %v1019
    %v1021 = vrot.slane %v1020, 1
    %v1022 = vadd.f32 %v1020, %v1021
    %v1023 = vrot.slane %v984, 4
    %v1024 = vadd.f32 %v984, %v1023
    %v1025 = vrot.slane %v1024, 2
    %v1026 = vadd.f32 %v1024, %v1025
    %v1027 = vrot.slane %v1026, 1
    %v1028 = vadd.f32 %v1026, %v1027
    %v1029 = vrot.slane %v986, 4
    %v1030 = vadd.f32 %v986, %v1029
    %v1031 = vrot.slane %v1030, 2
    %v1032 = vadd.f32 %v1030, %v1031
    %v1033 = vrot.slane %v1032, 1
    %v1034 = vadd.f32 %v1032, %v1033
    %v1035 = vrot.slane %v988, 4
    %v1036 = vadd.f32 %v988, %v1035
    %v1037 = vrot.slane %v1036, 2
    %v1038 = vadd.f32 %v1036, %v1037
    %v1039 = vrot.slane %v1038, 1
    %v1040 = vadd.f32 %v1038, %v1039
    %v1041 = vrot.slane %v990, 4
    %v1042 = vadd.f32 %v990, %v1041
    %v1043 = vrot.slane %v1042, 2
    %v1044 = vadd.f32 %v1042, %v1043
    %v1045 = vrot.slane %v1044, 1
    %v1046 = vadd.f32 %v1044, %v1045
    %v1047 = vrot.slane %v992, 4
    %v1048 = vadd.f32 %v992, %v1047
    %v1049 = vrot.slane %v1048, 2
    %v1050 = vadd.f32 %v1048, %v1049
    %v1051 = vrot.slane %v1050, 1
    %v1052 = vadd.f32 %v1050, %v1051
    %v1053 = vrot.slane %v994, 4
    %v1054 = vadd.f32 %v994, %v1053
    %v1055 = vrot.slane %v1054, 2
    %v1056 = vadd.f32 %v1054, %v1055
    %v1057 = vrot.slane %v1056, 1
    %v1058 = vadd.f32 %v1056, %v1057
    %v1059 = vrot.slane %v996, 4
    %v1060 = vadd.f32 %v996, %v1059
    %v1061 = vrot.slane %v1060, 2
    %v1062 = vadd.f32 %v1060, %v1061
    %v1063 = vrot.slane %v1062, 1
    %v1064 = vadd.f32 %v1062, %v1063
    %v1065 = vrot.slane %v998, 4
    %v1066 = vadd.f32 %v998, %v1065
    %v1067 = vrot.slane %v1066, 2
    %v1068 = vadd.f32 %v1066, %v1067
    %v1069 = vrot.slane %v1068, 1
    %v1070 = vadd.f32 %v1068, %v1069
    %v1071 = vrot.slane %v1000, 4
    %v1072 = vadd.f32 %v1000, %v1071
    %v1073 = vrot.slane %v1072, 2
    %v1074 = vadd.f32 %v1072, %v1073
    %v1075 = vrot.slane %v1074, 1
    %v1076 = vadd.f32 %v1074, %v1075
    %v1077 = vrot.slane %v1002, 4
    %v1078 = vadd.f32 %v1002, %v1077
    %v1079 = vrot.slane %v1078, 2
    %v1080 = vadd.f32 %v1078, %v1079
    %v1081 = vrot.slane %v1080, 1
    %v1082 = vadd.f32 %v1080, %v1081
    %v1083 = vrot.slane %v1004, 4
    %v1084 = vadd.f32 %v1004, %v1083
    %v1085 = vrot.slane %v1084, 2
    %v1086 = vadd.f32 %v1084, %v1085
    %v1087 = vrot.slane %v1086, 1
    %v1088 = vadd.f32 %v1086, %v1087
    %v1089 = vrot.slane %v1006, 4
    %v1090 = vadd.f32 %v1006, %v1089
    %v1091 = vrot.slane %v1090, 2
    %v1092 = vadd.f32 %v1090, %v1091
    %v1093 = vrot.slane %v1092, 1
    %v1094 = vadd.f32 %v1092, %v1093
    %v1095 = vrot.slane %v1008, 4
    %v1096 = vadd.f32 %v1008, %v1095
    %v1097 = vrot.slane %v1096, 2
    %v1098 = vadd.f32 %v1096, %v1097
    %v1099 = vrot.slane %v1098, 1
    %v1100 = vadd.f32 %v1098, %v1099
    %v1101 = vrot.slane %v1010, 4
    %v1102 = vadd.f32 %v1010, %v1101
    %v1103 = vrot.slane %v1102, 2
    %v1104 = vadd.f32 %v1102, %v1103
    %v1105 = vrot.slane %v1104, 1
    %v1106 = vadd.f32 %v1104, %v1105
    %v1107 = vrcp.pop %v1016
    %v1108 = vrcp.pop %v1022
    %v1109 = vrcp.pop %v1028
    %v1110 = vrcp.pop %v1034
    %v1111 = vrcp.pop %v1040
    %v1112 = vrcp.pop %v1046
    %v1113 = vrcp.pop %v1052
    %v1114 = vrcp.pop %v1058
    %v1115 = vrcp.pop %v1064
    %v1116 = vrcp.pop %v1070
    %v1117 = vrcp.pop %v1076
    %v1118 = vrcp.pop %v1082
    %v1119 = vrcp.pop %v1088
    %v1120 = vrcp.pop %v1094
    %v1121 = vrcp.pop %v1100
    %v1122 = vrcp.pop %v1106
    %v1123 = vmul.f32 %v980, %v1107
    %v1124 = vmul.f32 %v982, %v1108
    %v1125 = vmul.f32 %v984, %v1109
    %v1126 = vmul.f32 %v986, %v1110
    %v1127 = vmul.f32 %v988, %v1111
    %v1128 = vmul.f32 %v990, %v1112
    %v1129 = vmul.f32 %v992, %v1113
    %v1130 = vmul.f32 %v994, %v1114
    %v1131 = vmul.f32 %v996, %v1115
    %v1132 = vmul.f32 %v998, %v1116
    %v1133 = vmul.f32 %v1000, %v1117
    %v1134 = vmul.f32 %v1002, %v1118
    %v1135 = vmul.f32 %v1004, %v1119
    %v1136 = vmul.f32 %v1006, %v1120
    %v1137 = vmul.f32 %v1008, %v1121
    %v1138 = vmul.f32 %v1010, %v1122
    %v1139 = vmul.f32 %v1123, %v415
    %v1140 = vmul.f32 %v1124, %v415
    %v1141 = vmul.f32 %v1125, %v415
    %v1142 = vmul.f32 %v1126, %v415
    %v1143 = vmul.f32 %v1127, %v415
    %v1144 = vmul.f32 %v1128, %v415
    %v1145 = vmul.f32 %v1129, %v415
    %v1146 = vmul.f32 %v1130, %v415
    %v1147 = vmul.f32 %v1131, %v418
    %v1148 = vmul.f32 %v1132, %v418
    %v1149 = vmul.f32 %v1133, %v418
    %v1150 = vmul.f32 %v1134, %v418
    %v1151 = vmul.f32 %v1135, %v418
    %v1152 = vmul.f32 %v1136, %v418
    %v1153 = vmul.f32 %v1137, %v418
    %v1154 = vmul.f32 %v1138, %v418
    %v1155 = vrot.slane %v1139, 4
    %v1156 = vadd.f32 %v1139, %v1155
    %v1157 = vrot.slane %v1156, 2
    %v1158 = vadd.f32 %v1156, %v1157
    %v1159 = vrot.slane %v1158, 1
    %v1160 = vadd.f32 %v1158, %v1159
    %v1161 = vrot.slane %v1140, 4
    %v1162 = vadd.f32 %v1140, %v1161
    %v1163 = vrot.slane %v1162, 2
    %v1164 = vadd.f32 %v1162, %v1163
    %v1165 = vrot.slane %v1164, 1
    %v1166 = vadd.f32 %v1164, %v1165
    %v1167 = vrot.slane %v1141, 4
    %v1168 = vadd.f32 %v1141, %v1167
    %v1169 = vrot.slane %v1168, 2
    %v1170 = vadd.f32 %v1168, %v1169
    %v1171 = vrot.slane %v1170, 1
    %v1172 = vadd.f32 %v1170, %v1171
    %v1173 = vrot.slane %v1142, 4
    %v1174 = vadd.f32 %v1142, %v1173
    %v1175 = vrot.slane %v1174, 2
    %v1176 = vadd.f32 %v1174, %v1175
    %v1177 = vrot.slane %v1176, 1
    %v1178 = vadd.f32 %v1176, %v1177
    %v1179 = vrot.slane %v1143, 4
    %v1180 = vadd.f32 %v1143, %v1179
    %v1181 = vrot.slane %v1180, 2
    %v1182 = vadd.f32 %v1180, %v1181
    %v1183 = vrot.slane %v1182, 1
    %v1184 = vadd.f32 %v1182, %v1183
    %v1185 = vrot.slane %v1144, 4
    %v1186 = vadd.f32 %v1144, %v1185
    %v1187 = vrot.slane %v1186, 2
    %v1188 = vadd.f32 %v1186, %v1187
    %v1189 = vrot.slane %v1188, 1
    %v1190 = vadd.f32 %v1188, %v1189
    %v1191 = vrot.slane %v1145, 4
    %v1192 = vadd.f32 %v1145, %v1191
    %v1193 = vrot.slane %v1192, 2
    %v1194 = vadd.f32 %v1192, %v1193
    %v1195 = vrot.slane %v1194, 1
    %v1196 = vadd.f32 %v1194, %v1195
    %v1197 = vrot.slane %v1146, 4
    %v1198 = vadd.f32 %v1146, %v1197
    %v1199 = vrot.slane %v1198, 2
    %v1200 = vadd.f32 %v1198, %v1199
    %v1201 = vrot.slane %v1200, 1
    %v1202 = vadd.f32 %v1200, %v1201
    %v1203 = vrot.slane %v1147, 4
    %v1204 = vadd.f32 %v1147, %v1203
    %v1205 = vrot.slane %v1204, 2
    %v1206 = vadd.f32 %v1204, %v1205
    %v1207 = vrot.slane %v1206, 1
    %v1208 = vadd.f32 %v1206, %v1207
    %v1209 = vrot.slane %v1148, 4
    %v1210 = vadd.f32 %v1148, %v1209
    %v1211 = vrot.slane %v1210, 2
    %v1212 = vadd.f32 %v1210, %v1211
    %v1213 = vrot.slane %v1212, 1
    %v1214 = vadd.f32 %v1212, %v1213
    %v1215 = vrot.slane %v1149, 4
    %v1216 = vadd.f32 %v1149, %v1215
    %v1217 = vrot.slane %v1216, 2
    %v1218 = vadd.f32 %v1216, %v1217
    %v1219 = vrot.slane %v1218, 1
    %v1220 = vadd.f32 %v1218, %v1219
    %v1221 = vrot.slane %v1150, 4
    %v1222 = vadd.f32 %v1150, %v1221
    %v1223 = vrot.slane %v1222, 2
    %v1224 = vadd.f32 %v1222, %v1223
    %v1225 = vrot.slane %v1224, 1
    %v1226 = vadd.f32 %v1224, %v1225
    %v1227 = vrot.slane %v1151, 4
    %v1228 = vadd.f32 %v1151, %v1227
    %v1229 = vrot.slane %v1228, 2
    %v1230 = vadd.f32 %v1228, %v1229
    %v1231 = vrot.slane %v1230, 1
    %v1232 = vadd.f32 %v1230, %v1231
    %v1233 = vrot.slane %v1152, 4
    %v1234 = vadd.f32 %v1152, %v1233
    %v1235 = vrot.slane %v1234, 2
    %v1236 = vadd.f32 %v1234, %v1235
    %v1237 = vrot.slane %v1236, 1
    %v1238 = vadd.f32 %v1236, %v1237
    %v1239 = vrot.slane %v1153, 4
    %v1240 = vadd.f32 %v1153, %v1239
    %v1241 = vrot.slane %v1240, 2
    %v1242 = vadd.f32 %v1240, %v1241
    %v1243 = vrot.slane %v1242, 1
    %v1244 = vadd.f32 %v1242, %v1243
    %v1245 = vrot.slane %v1154, 4
    %v1246 = vadd.f32 %v1154, %v1245
    %v1247 = vrot.slane %v1246, 2
    %v1248 = vadd.f32 %v1246, %v1247
    %v1249 = vrot.slane %v1248, 1
    %v1250 = vadd.f32 %v1248, %v1249
    %v1251 = vpack.c.bf16 %v1160, %v1160
    %v1252 = vpack.c.bf16 %v1166, %v1166
    %v1253 = vpack.c.bf16 %v1172, %v1172
    %v1254 = vpack.c.bf16 %v1178, %v1178
    %v1255 = vpack.c.bf16 %v1184, %v1184
    %v1256 = vpack.c.bf16 %v1190, %v1190
    %v1257 = vpack.c.bf16 %v1196, %v1196
    %v1258 = vpack.c.bf16 %v1202, %v1202
    %v1259 = vpack.c.bf16 %v1208, %v1208
    %v1260 = vpack.c.bf16 %v1214, %v1214
    %v1261 = vpack.c.bf16 %v1220, %v1220
    %v1262 = vpack.c.bf16 %v1226, %v1226
    %v1263 = vpack.c.bf16 %v1232, %v1232
    %v1264 = vpack.c.bf16 %v1238, %v1238
    %v1265 = vpack.c.bf16 %v1244, %v1244
    %v1266 = vpack.c.bf16 %v1250, %v1250
    %v1267 = vld [vmem:[%s6] sm:$0xf]
    %v1268 = vld [vmem:[%s6 + $0x4] sm:$0xf]
    %v1269 = vld [vmem:[%s6 + $0x8] sm:$0xf]
    %v1270 = vld [vmem:[%s6 + $0xc] sm:$0xf]
    %v1271 = vld [vmem:[%s6 + $0x10] sm:$0xf]
    %v1272 = vld [vmem:[%s6 + $0x14] sm:$0xf]
    %v1273 = vld [vmem:[%s6 + $0x18] sm:$0xf]
    %v1274 = vld [vmem:[%s6 + $0x1c] sm:$0xf]
    %v1275 = vld [vmem:[%s6 + $0x20] sm:$0xf]
    %v1276 = vld [vmem:[%s6 + $0x24] sm:$0xf]
    %v1277 = vld [vmem:[%s6 + $0x28] sm:$0xf]
    %v1278 = vld [vmem:[%s6 + $0x2c] sm:$0xf]
    %v1279 = vld [vmem:[%s6 + $0x30] sm:$0xf]
    %v1280 = vld [vmem:[%s6 + $0x34] sm:$0xf]
    %v1281 = vld [vmem:[%s6 + $0x38] sm:$0xf]
    %v1282 = vld [vmem:[%s6 + $0x3c] sm:$0xf]
    %v1283 = vld [vmem:[%s7] sm:$0x1]
    %v1285 = vlaneseq
    %v1286 = vshrl.u32 %v1285, 7
    %v1287 = vsub.s32 0, %v1286
    %v1288 = vrot.slane %v1283, %v1287
    %v1306 = vunpack.c.l.b16 %v1251
    %v1307 = vunpack.c.l.b16 %v1252
    %v1308 = vunpack.c.l.b16 %v1253
    %v1309 = vunpack.c.l.b16 %v1254
    %v1310 = vunpack.c.l.b16 %v1255
    %v1311 = vunpack.c.l.b16 %v1256
    %v1312 = vunpack.c.l.b16 %v1257
    %v1313 = vunpack.c.l.b16 %v1258
    %v1314 = vunpack.c.l.b16 %v1259
    %v1315 = vunpack.c.l.b16 %v1260
    %v1316 = vunpack.c.l.b16 %v1261
    %v1317 = vunpack.c.l.b16 %v1262
    %v1318 = vunpack.c.l.b16 %v1263
    %v1319 = vunpack.c.l.b16 %v1264
    %v1320 = vunpack.c.l.b16 %v1265
    %v1321 = vunpack.c.l.b16 %v1266
    %vm1322 = vcmask 1041409
    %v1323 = vsel %vm1322, %v1307, %v1306
    %vm1324 = vcmask 1042434
    %v1325 = vsel %vm1324, %v1308, %v1323
    %vm1326 = vcmask 1043459
    %v1327 = vsel %vm1326, %v1309, %v1325
    %vm1328 = vcmask 1044484
    %v1329 = vsel %vm1328, %v1310, %v1327
    %vm1330 = vcmask 1045509
    %v1331 = vsel %vm1330, %v1311, %v1329
    %vm1332 = vcmask 1046534
    %v1333 = vsel %vm1332, %v1312, %v1331
    %vm1334 = vcmask 1047559
    %v1335 = vsel %vm1334, %v1313, %v1333
    %v1336 = vsel %vm1322, %v1315, %v1314
    %v1337 = vsel %vm1324, %v1316, %v1336
    %v1338 = vsel %vm1326, %v1317, %v1337
    %v1339 = vsel %vm1328, %v1318, %v1338
    %v1340 = vsel %vm1330, %v1319, %v1339
    %v1341 = vsel %vm1332, %v1320, %v1340
    %v1342 = vsel %vm1334, %v1321, %v1341
    %v1343 = vpack.c.b16 %v1342, %v1335
    %v1361 = vunpack.c.l.b16 %v1267
    %v1362 = vunpack.c.l.b16 %v1268
    %v1363 = vunpack.c.l.b16 %v1269
    %v1364 = vunpack.c.l.b16 %v1270
    %v1365 = vunpack.c.l.b16 %v1271
    %v1366 = vunpack.c.l.b16 %v1272
    %v1367 = vunpack.c.l.b16 %v1273
    %v1368 = vunpack.c.l.b16 %v1274
    %v1369 = vunpack.c.l.b16 %v1275
    %v1370 = vunpack.c.l.b16 %v1276
    %v1371 = vunpack.c.l.b16 %v1277
    %v1372 = vunpack.c.l.b16 %v1278
    %v1373 = vunpack.c.l.b16 %v1279
    %v1374 = vunpack.c.l.b16 %v1280
    %v1375 = vunpack.c.l.b16 %v1281
    %v1376 = vunpack.c.l.b16 %v1282
    %v1377 = vpack.c.b16 %v1362, %v1361
    %v1378 = vpack.c.b16 %v1364, %v1363
    %v1379 = vpack.c.b16 %v1366, %v1365
    %v1380 = vpack.c.b16 %v1368, %v1367
    %v1381 = vpack.c.b16 %v1370, %v1369
    %v1382 = vpack.c.b16 %v1372, %v1371
    %v1383 = vpack.c.b16 %v1374, %v1373
    %v1384 = vpack.c.b16 %v1376, %v1375
    %1393 = vmatprep.subr.bf16.mxu0 0
    %1394 = vmatpush1.bf16.msra.mxu0 %v1384
    %1395 = vmatprep.subr.bf16.mxu0 0
    %1396 = vmatpush1.bf16.msra.mxu0 %v1383
    %1397 = vmatprep.subr.bf16.mxu0 0
    %1398 = vmatpush1.bf16.msra.mxu0 %v1382
    %1399 = vmatprep.subr.bf16.mxu0 0
    %1400 = vmatpush1.bf16.msra.mxu0 %v1381
    %1401 = vmatprep.subr.bf16.mxu0 0
    %1402 = vmatpush1.bf16.msra.mxu0 %v1380
    %1403 = vmatprep.subr.bf16.mxu0 0
    %1404 = vmatpush1.bf16.msra.mxu0 %v1379
    %1405 = vmatprep.subr.bf16.mxu0 0
    %1406 = vmatpush1.bf16.msra.mxu0 %v1378
    %1407 = vmatprep.subr.bf16.mxu0 0
    %1408 = vmatpush1.bf16.msra.mxu0 %v1377
    %1409 = vmatprep.subr.bf16.mxu0 0
    %1410 = vmatpush2.bf16.msra.mxu0 0
    %1411 = vmatprep.subr.bf16.mxu0 0
    %1412 = vmatpush2.bf16.msra.mxu0 0
    %1413 = vmatprep.subr.bf16.mxu0 0
    %1414 = vmatpush2.bf16.msra.mxu0 0
    %1415 = vmatprep.subr.bf16.mxu0 0
    %1416 = vmatpush2.bf16.msra.mxu0 0
    %1417 = vmatprep.subr.bf16.mxu0 0
    %1418 = vmatpush2.bf16.msra.mxu0 0
    %1419 = vmatprep.subr.bf16.mxu0 0
    %1420 = vmatpush2.bf16.msra.mxu0 0
    %1421 = vmatprep.subr.bf16.mxu0 0
    %1422 = vmatpush2.bf16.msra.mxu0 0
    %1423 = vmatprep.subr.bf16.mxu0 0
    %1424 = vmatpush2.bf16.msra.mxu0 0
    %1425 = vmatprep.mubr.bf16.mxu0 0
    %1426 = vmatmul.mubr.bf16.gmra.mxu0 %v1343
    %v1427 = vpop.f32.mrf.mxu0
    %v1428 = vadd.f32 %v1288, %v1427
    %v1429 = vpop.f32.mrf.mxu0
    %v1430 = vpop.f32.mrf.mxu0
    %v1431 = vadd.f32 %v1288, %v1430
    %v1432 = vpop.f32.mrf.mxu0
    %1433 = vdwg.mxu0
    %v1434 = vpack.c.bf16 %v1431, %v1428
    %v1435 = vld [vmem:[%s1] sm:$0x1]
    %v1436 = vld [vmem:[%s1 + $0x1] sm:$0x1]
    %v1437 = vld [vmem:[#allocation5] sm:$0xf]
    %v1438 = vld [vmem:[#allocation5 + $0x4] sm:$0xf]
    %v1439 = vld [vmem:[#allocation5 + $0x8] sm:$0xf]
    %v1440 = vld [vmem:[#allocation5 + $0xc] sm:$0xf]
    %v1441 = vld [vmem:[#allocation5 + $0x10] sm:$0xf]
    %v1442 = vld [vmem:[#allocation5 + $0x14] sm:$0xf]
    %v1443 = vld [vmem:[#allocation5 + $0x18] sm:$0xf]
    %v1444 = vld [vmem:[#allocation5 + $0x1c] sm:$0xf]
    %v1445 = vld [vmem:[#allocation5 + $0x20] sm:$0xf]
    %v1446 = vld [vmem:[#allocation5 + $0x24] sm:$0xf]
    %v1447 = vld [vmem:[#allocation5 + $0x28] sm:$0xf]
    %v1448 = vld [vmem:[#allocation5 + $0x2c] sm:$0xf]
    %v1449 = vld [vmem:[#allocation5 + $0x30] sm:$0xf]
    %v1450 = vld [vmem:[#allocation5 + $0x34] sm:$0xf]
    %v1451 = vld [vmem:[#allocation5 + $0x38] sm:$0xf]
    %v1452 = vld [vmem:[#allocation5 + $0x3c] sm:$0xf]
    %v1453 = vld [vmem:[%s9] sm:$0x1]
    %v1455 = vlaneseq
    %v1456 = vshrl.u32 %v1455, 7
    %v1457 = vsub.s32 0, %v1456
    %v1458 = vrot.slane %v1453, %v1457
    %v1463 = vunpack.c.l.s4 1966171168
    %v1464 = vunpack.c.0.s8 %v1463
    %v1465 = vlaneseq
    %v1466 = vshrl.u32 %v1465, 7
    %v1467 = vsub.s32 %v1464, %v1466
    %v1468 = vrot.slane %v1435, %v1467
    %v1470 = vunpack.c.l.s4 1966171168
    %v1471 = vunpack.c.0.s8 %v1470
    %v1472 = vlaneseq
    %v1473 = vshrl.u32 %v1472, 7
    %v1474 = vsub.s32 %v1471, %v1473
    %v1475 = vrot.slane %v1468, %v1474
    %v1477 = vunpack.c.l.s4 1966171168
    %v1478 = vunpack.c.0.s8 %v1477
    %v1479 = vlaneseq
    %v1480 = vshrl.u32 %v1479, 7
    %v1481 = vsub.s32 %v1478, %v1480
    %v1482 = vrot.slane %v1436, %v1481
    %v1484 = vunpack.c.l.s4 1966171168
    %v1485 = vunpack.c.0.s8 %v1484
    %v1486 = vlaneseq
    %v1487 = vshrl.u32 %v1486, 7
    %v1488 = vsub.s32 %v1485, %v1487
    %v1489 = vrot.slane %v1482, %v1488
    %v1490 = vunpack.c.l.b16 %v1475
    %v1491 = vunpack.c.l.b16 %v1489
    %v1492 = vrot.slane %v1491, 7
    %v1493 = vsel %vm1322, %v1492, %v1490
    %v1494 = vpack.c.b16 %v1493, %v1493
    %v1512 = vunpack.c.l.b16 %v1437
    %v1513 = vunpack.c.l.b16 %v1438
    %v1514 = vunpack.c.l.b16 %v1439
    %v1515 = vunpack.c.l.b16 %v1440
    %v1516 = vunpack.c.l.b16 %v1441
    %v1517 = vunpack.c.l.b16 %v1442
    %v1518 = vunpack.c.l.b16 %v1443
    %v1519 = vunpack.c.l.b16 %v1444
    %v1520 = vunpack.c.l.b16 %v1445
    %v1521 = vunpack.c.l.b16 %v1446
    %v1522 = vunpack.c.l.b16 %v1447
    %v1523 = vunpack.c.l.b16 %v1448
    %v1524 = vunpack.c.l.b16 %v1449
    %v1525 = vunpack.c.l.b16 %v1450
    %v1526 = vunpack.c.l.b16 %v1451
    %v1527 = vunpack.c.l.b16 %v1452
    %v1528 = vpack.c.b16 %v1513, %v1512
    %v1529 = vpack.c.b16 %v1515, %v1514
    %v1530 = vpack.c.b16 %v1517, %v1516
    %v1531 = vpack.c.b16 %v1519, %v1518
    %v1532 = vpack.c.b16 %v1521, %v1520
    %v1533 = vpack.c.b16 %v1523, %v1522
    %v1534 = vpack.c.b16 %v1525, %v1524
    %v1535 = vpack.c.b16 %v1527, %v1526
    %1544 = vmatprep.subr.bf16.mxu0 0
    %1545 = vmatpush1.bf16.msra.mxu0 %v1535
    %1546 = vmatprep.subr.bf16.mxu0 0
    %1547 = vmatpush1.bf16.msra.mxu0 %v1534
    %1548 = vmatprep.subr.bf16.mxu0 0
    %1549 = vmatpush1.bf16.msra.mxu0 %v1533
    %1550 = vmatprep.subr.bf16.mxu0 0
    %1551 = vmatpush1.bf16.msra.mxu0 %v1532
    %1552 = vmatprep.subr.bf16.mxu0 0
    %1553 = vmatpush1.bf16.msra.mxu0 %v1531
    %1554 = vmatprep.subr.bf16.mxu0 0
    %1555 = vmatpush1.bf16.msra.mxu0 %v1530
    %1556 = vmatprep.subr.bf16.mxu0 0
    %1557 = vmatpush1.bf16.msra.mxu0 %v1529
    %1558 = vmatprep.subr.bf16.mxu0 0
    %1559 = vmatpush1.bf16.msra.mxu0 %v1528
    %1560 = vmatprep.subr.bf16.mxu0 0
    %1561 = vmatpush2.bf16.msra.mxu0 0
    %1562 = vmatprep.subr.bf16.mxu0 0
    %1563 = vmatpush2.bf16.msra.mxu0 0
    %1564 = vmatprep.subr.bf16.mxu0 0
    %1565 = vmatpush2.bf16.msra.mxu0 0
    %1566 = vmatprep.subr.bf16.mxu0 0
    %1567 = vmatpush2.bf16.msra.mxu0 0
    %1568 = vmatprep.subr.bf16.mxu0 0
    %1569 = vmatpush2.bf16.msra.mxu0 0
    %1570 = vmatprep.subr.bf16.mxu0 0
    %1571 = vmatpush2.bf16.msra.mxu0 0
    %1572 = vmatprep.subr.bf16.mxu0 0
    %1573 = vmatpush2.bf16.msra.mxu0 0
    %1574 = vmatprep.subr.bf16.mxu0 0
    %1575 = vmatpush2.bf16.msra.mxu0 0
    %1576 = vmatprep.mubr.bf16.mxu0 0
    %1577 = vmatmul.mubr.bf16.gmra.mxu0 %v1494
    %v1578 = vpop.f32.mrf.mxu0
    %v1579 = vadd.f32 %v1458, %v1578
    %v1580 = vpop.f32.mrf.mxu0
    %v1581 = vpop.f32.mrf.mxu0
    %v1582 = vpop.f32.mrf.mxu0
    %1583 = vdwg.mxu0
    %v1584 = vmul.f32 %v1579, 0.25
    %v1585 = vld [vmem:[#allocation7] sm:$0xff]
    %v1586 = vld [vmem:[#allocation7 + $0x8] sm:$0xff]
    %v1587 = vld [vmem:[#allocation7 + $0x10] sm:$0xff]
    %v1588 = vld [vmem:[#allocation7 + $0x18] sm:$0xff]
    %v1589 = vld [vmem:[#allocation7 + $0x20] sm:$0xff]
    %v1590 = vld [vmem:[#allocation7 + $0x28] sm:$0xff]
    %v1591 = vld [vmem:[#allocation7 + $0x30] sm:$0xff]
    %v1592 = vld [vmem:[#allocation7 + $0x38] sm:$0xff]
    %v1593 = vld [vmem:[#allocation7 + $0x40] sm:$0xff]
    %v1594 = vld [vmem:[#allocation7 + $0x48] sm:$0xff]
    %v1595 = vld [vmem:[#allocation7 + $0x50] sm:$0xff]
    %v1596 = vld [vmem:[#allocation7 + $0x58] sm:$0xff]
    %v1597 = vld [vmem:[#allocation7 + $0x60] sm:$0xff]
    %v1598 = vld [vmem:[#allocation7 + $0x68] sm:$0xff]
    %v1599 = vld [vmem:[#allocation7 + $0x70] sm:$0xff]
    %v1600 = vld [vmem:[#allocation7 + $0x78] sm:$0xff]
    %v1601 = vld [vmem:[%s11] sm:$0x3]
    %v1603 = vlaneseq
    %v1604 = vshrl.u32 %v1603, 7
    %v1605 = vsub.s32 0, %v1604
    %v1606 = vrot.slane %v1601, %v1605
    %v1607 = vlaneseq
    %v1608 = vshrl.u32 %v1607, 7
    %v1609 = vsub.s32 1, %v1608
    %v1610 = vrot.slane %v1601, %v1609
    %v1629 = vunpack.c.l.b16 %v1585
    %v1630 = vunpack.c.h.b16 %v1585
    %v1631 = vunpack.c.l.b16 %v1586
    %v1632 = vunpack.c.h.b16 %v1586
    %v1633 = vunpack.c.l.b16 %v1587
    %v1634 = vunpack.c.h.b16 %v1587
    %v1635 = vunpack.c.l.b16 %v1588
    %v1636 = vunpack.c.h.b16 %v1588
    %v1637 = vunpack.c.l.b16 %v1589
    %v1638 = vunpack.c.h.b16 %v1589
    %v1639 = vunpack.c.l.b16 %v1590
    %v1640 = vunpack.c.h.b16 %v1590
    %v1641 = vunpack.c.l.b16 %v1591
    %v1642 = vunpack.c.h.b16 %v1591
    %v1643 = vunpack.c.l.b16 %v1592
    %v1644 = vunpack.c.h.b16 %v1592
    %v1645 = vunpack.c.l.b16 %v1593
    %v1646 = vunpack.c.h.b16 %v1593
    %v1647 = vunpack.c.l.b16 %v1594
    %v1648 = vunpack.c.h.b16 %v1594
    %v1649 = vunpack.c.l.b16 %v1595
    %v1650 = vunpack.c.h.b16 %v1595
    %v1651 = vunpack.c.l.b16 %v1596
    %v1652 = vunpack.c.h.b16 %v1596
    %v1653 = vunpack.c.l.b16 %v1597
    %v1654 = vunpack.c.h.b16 %v1597
    %v1655 = vunpack.c.l.b16 %v1598
    %v1656 = vunpack.c.h.b16 %v1598
    %v1657 = vunpack.c.l.b16 %v1599
    %v1658 = vunpack.c.h.b16 %v1599
    %v1659 = vunpack.c.l.b16 %v1600
    %v1660 = vunpack.c.h.b16 %v1600
    %v1661 = vpack.c.b16 %v1631, %v1629
    %v1662 = vpack.c.b16 %v1632, %v1630
    %v1663 = vpack.c.b16 %v1635, %v1633
    %v1664 = vpack.c.b16 %v1636, %v1634
    %v1665 = vpack.c.b16 %v1639, %v1637
    %v1666 = vpack.c.b16 %v1640, %v1638
    %v1667 = vpack.c.b16 %v1643, %v1641
    %v1668 = vpack.c.b16 %v1644, %v1642
    %v1669 = vpack.c.b16 %v1647, %v1645
    %v1670 = vpack.c.b16 %v1648, %v1646
    %v1671 = vpack.c.b16 %v1651, %v1649
    %v1672 = vpack.c.b16 %v1652, %v1650
    %v1673 = vpack.c.b16 %v1655, %v1653
    %v1674 = vpack.c.b16 %v1656, %v1654
    %v1675 = vpack.c.b16 %v1659, %v1657
    %v1676 = vpack.c.b16 %v1660, %v1658
    %1693 = vmatprep.subr.bf16.mxu0 %v1676
    %1694 = vmatpush1.bf16.msra.mxu0 %v1675
    %1695 = vmatprep.subr.bf16.mxu0 %v1674
    %1696 = vmatpush1.bf16.msra.mxu0 %v1673
    %1697 = vmatprep.subr.bf16.mxu0 %v1672
    %1698 = vmatpush1.bf16.msra.mxu0 %v1671
    %1699 = vmatprep.subr.bf16.mxu0 %v1670
    %1700 = vmatpush1.bf16.msra.mxu0 %v1669
    %1701 = vmatprep.subr.bf16.mxu0 %v1668
    %1702 = vmatpush1.bf16.msra.mxu0 %v1667
    %1703 = vmatprep.subr.bf16.mxu0 %v1666
    %1704 = vmatpush1.bf16.msra.mxu0 %v1665
    %1705 = vmatprep.subr.bf16.mxu0 %v1664
    %1706 = vmatpush1.bf16.msra.mxu0 %v1663
    %1707 = vmatprep.subr.bf16.mxu0 %v1662
    %1708 = vmatpush1.bf16.msra.mxu0 %v1661
    %1709 = vmatprep.subr.bf16.mxu0 0
    %1710 = vmatpush2.bf16.msra.mxu0 0
    %1711 = vmatprep.subr.bf16.mxu0 0
    %1712 = vmatpush2.bf16.msra.mxu0 0
    %1713 = vmatprep.subr.bf16.mxu0 0
    %1714 = vmatpush2.bf16.msra.mxu0 0
    %1715 = vmatprep.subr.bf16.mxu0 0
    %1716 = vmatpush2.bf16.msra.mxu0 0
    %1717 = vmatprep.subr.bf16.mxu0 0
    %1718 = vmatpush2.bf16.msra.mxu0 0
    %1719 = vmatprep.subr.bf16.mxu0 0
    %1720 = vmatpush2.bf16.msra.mxu0 0
    %1721 = vmatprep.subr.bf16.mxu0 0
    %1722 = vmatpush2.bf16.msra.mxu0 0
    %1723 = vmatprep.subr.bf16.mxu0 0
    %1724 = vmatpush2.bf16.msra.mxu0 0
    %1725 = vmatprep.mubr.bf16.mxu0 0
    %1726 = vmatmul.mubr.bf16.gmra.mxu0 %v1434
    %v1727 = vpop.f32.mrf.mxu0
    %v1728 = vadd.f32 %v1606, %v1727
    %v1729 = vpop.f32.mrf.mxu0
    %v1730 = vadd.f32 %v1610, %v1729
    %v1731 = vpop.f32.mrf.mxu0
    %v1732 = vadd.f32 %v1606, %v1731
    %v1733 = vpop.f32.mrf.mxu0
    %v1734 = vadd.f32 %v1610, %v1733
    %1735 = vdwg.mxu0
    %v1738 = vunpack.c.l.s4 1966171168
    %v1739 = vunpack.c.0.s8 %v1738
    %v1740 = vlaneseq
    %v1741 = vshrl.u32 %v1740, 7
    %v1742 = vsub.s32 %v1739, %v1741
    %v1743 = vrot.slane %v1584, %v1742
    %v1744 = vcombine.high %v1743, %v1743
    %v1746 = vunpack.c.l.s4 1966171168
    %v1747 = vunpack.c.0.s8 %v1746
    %v1748 = vlaneseq
    %v1749 = vshrl.u32 %v1748, 7
    %v1750 = vsub.s32 %v1747, %v1749
    %v1751 = vrot.slane %v1743, %v1750
    %v1753 = vunpack.c.l.s4 1966171168
    %v1754 = vunpack.c.0.s8 %v1753
    %v1755 = vlaneseq
    %v1756 = vshrl.u32 %v1755, 7
    %v1757 = vsub.s32 %v1754, %v1756
    %v1758 = vrot.slane %v1744, %v1757
    %v1759 = vlaneseq
    %v1760 = vshrl.u32 %v1759, 7
    %v1761 = vsub.s32 0, %v1760
    %v1762 = vrot.slane %v1751, %v1761
    %v1763 = vlaneseq
    %v1764 = vshrl.u32 %v1763, 7
    %v1765 = vsub.s32 0, %v1764
    %v1766 = vrot.slane %v1758, %v1765
    %v1769 = vmul.f32 %v1762, %v1728
    %v1770 = vmul.f32 %v1766, %v1732
    %1771 = vrot.lane.b32.xlu0 %v1769, 8
    %v1772 = vpop.permute.xlu0 %1771
    %1773 = vrot.lane.b32.xlu0 %v1770, 8
    %v1774 = vpop.permute.xlu0 %1773
    %v1775 = vadd.f32 %v1769, %v1772
    %v1776 = vadd.f32 %v1770, %v1774
    %1777 = vrot.lane.b32.xlu0 %v1775, 16
    %v1778 = vpop.permute.xlu0 %1777
    %1779 = vrot.lane.b32.xlu0 %v1776, 16
    %v1780 = vpop.permute.xlu0 %1779
    %v1781 = vadd.f32 %v1775, %v1778
    %v1782 = vadd.f32 %v1776, %v1780
    %1783 = vrot.lane.b32.xlu0 %v1781, 32
    %v1784 = vpop.permute.xlu0 %1783
    %1785 = vrot.lane.b32.xlu0 %v1782, 32
    %v1786 = vpop.permute.xlu0 %1785
    %v1787 = vadd.f32 %v1781, %v1784
    %v1788 = vadd.f32 %v1782, %v1786
    %1789 = vrot.lane.b32.xlu0 %v1787, 64
    %v1790 = vpop.permute.xlu0 %1789
    %1791 = vrot.lane.b32.xlu0 %v1788, 64
    %v1792 = vpop.permute.xlu0 %1791
    %v1793 = vadd.f32 %v1787, %v1790
    %v1794 = vadd.f32 %v1788, %v1792
    %1796 = vset.pattern.permute.xlu0 0
    %1797 = vperm.xlu0 %1796, %v151
    %v1798 = vpop.permute.xlu0 %1797
    %v1800 = vadd.f32 %v1793, %v1798
    %v1801 = vadd.f32 %v1794, %v1798
    %v1802 = vrot.slane %v1800, 4
    %v1803 = vmax.f32 %v1800, %v1802
    %v1804 = vrot.slane %v1803, 2
    %v1805 = vmax.f32 %v1803, %v1804
    %v1806 = vrot.slane %v1805, 1
    %v1807 = vmax.f32 %v1805, %v1806
    %v1808 = vrot.slane %v1801, 4
    %v1809 = vmax.f32 %v1801, %v1808
    %v1810 = vrot.slane %v1809, 2
    %v1811 = vmax.f32 %v1809, %v1810
    %v1812 = vrot.slane %v1811, 1
    %v1813 = vmax.f32 %v1811, %v1812
    %v1814 = vsub.f32 %v1800, %v1807
    %v1815 = vsub.f32 %v1801, %v1813
    %v1816 = vmul.f32 %v1814, 1.442695
    %v1817 = vpow.pop %v1816
    %v1818 = vmul.f32 %v1815, 1.442695
    %v1819 = vpow.pop %v1818
    %v1820 = vrot.slane %v1817, 4
    %v1821 = vadd.f32 %v1817, %v1820
    %v1822 = vrot.slane %v1821, 2
    %v1823 = vadd.f32 %v1821, %v1822
    %v1824 = vrot.slane %v1823, 1
    %v1825 = vadd.f32 %v1823, %v1824
    %v1826 = vrot.slane %v1819, 4
    %v1827 = vadd.f32 %v1819, %v1826
    %v1828 = vrot.slane %v1827, 2
    %v1829 = vadd.f32 %v1827, %v1828
    %v1830 = vrot.slane %v1829, 1
    %v1831 = vadd.f32 %v1829, %v1830
    %v1832 = vrcp.pop %v1825
    %v1833 = vrcp.pop %v1831
    %v1834 = vmul.f32 %v1817, %v1832
    %v1835 = vmul.f32 %v1819, %v1833
    %v1836 = vmul.f32 %v1834, %v1730
    %v1837 = vmul.f32 %v1835, %v1734
    %v1838 = vrot.slane %v1836, 4
    %v1839 = vadd.f32 %v1836, %v1838
    %v1840 = vrot.slane %v1839, 2
    %v1841 = vadd.f32 %v1839, %v1840
    %v1842 = vrot.slane %v1841, 1
    %v1843 = vadd.f32 %v1841, %v1842
    %v1844 = vrot.slane %v1837, 4
    %v1845 = vadd.f32 %v1837, %v1844
    %v1846 = vrot.slane %v1845, 2
    %v1847 = vadd.f32 %v1845, %v1846
    %v1848 = vrot.slane %v1847, 1
    %v1849 = vadd.f32 %v1847, %v1848
    %v1850 = vpack.c.bf16 %v1843, %v1843
    %v1851 = vpack.c.bf16 %v1849, %v1849
    %v1852 = vld [vmem:[#allocation8] sm:$0xf]
    %v1853 = vld [vmem:[#allocation8 + $0x4] sm:$0xf]
    %v1854 = vld [vmem:[#allocation8 + $0x8] sm:$0xf]
    %v1855 = vld [vmem:[#allocation8 + $0xc] sm:$0xf]
    %v1856 = vld [vmem:[#allocation8 + $0x10] sm:$0xf]
    %v1857 = vld [vmem:[#allocation8 + $0x14] sm:$0xf]
    %v1858 = vld [vmem:[#allocation8 + $0x18] sm:$0xf]
    %v1859 = vld [vmem:[#allocation8 + $0x1c] sm:$0xf]
    %v1860 = vld [vmem:[#allocation8 + $0x20] sm:$0xf]
    %v1861 = vld [vmem:[#allocation8 + $0x24] sm:$0xf]
    %v1862 = vld [vmem:[#allocation8 + $0x28] sm:$0xf]
    %v1863 = vld [vmem:[#allocation8 + $0x2c] sm:$0xf]
    %v1864 = vld [vmem:[#allocation8 + $0x30] sm:$0xf]
    %v1865 = vld [vmem:[#allocation8 + $0x34] sm:$0xf]
    %v1866 = vld [vmem:[#allocation8 + $0x38] sm:$0xf]
    %v1867 = vld [vmem:[#allocation8 + $0x3c] sm:$0xf]
    %v1868 = vld [vmem:[%s13] sm:$0x1]
    %v1870 = vlaneseq
    %v1871 = vshrl.u32 %v1870, 7
    %v1872 = vsub.s32 0, %v1871
    %v1873 = vrot.slane %v1868, %v1872
    %v1877 = vunpack.c.l.b16 %v1850
    %v1878 = vunpack.c.l.b16 %v1851
    %v1879 = vsel %vm1322, %v1878, %v1877
    %v1880 = vpack.c.b16 %v1879, %v1879
    %v1898 = vunpack.c.l.b16 %v1852
    %v1899 = vunpack.c.l.b16 %v1853
    %v1900 = vunpack.c.l.b16 %v1854
    %v1901 = vunpack.c.l.b16 %v1855
    %v1902 = vunpack.c.l.b16 %v1856
    %v1903 = vunpack.c.l.b16 %v1857
    %v1904 = vunpack.c.l.b16 %v1858
    %v1905 = vunpack.c.l.b16 %v1859
    %v1906 = vunpack.c.l.b16 %v1860
    %v1907 = vunpack.c.l.b16 %v1861
    %v1908 = vunpack.c.l.b16 %v1862
    %v1909 = vunpack.c.l.b16 %v1863
    %v1910 = vunpack.c.l.b16 %v1864
    %v1911 = vunpack.c.l.b16 %v1865
    %v1912 = vunpack.c.l.b16 %v1866
    %v1913 = vunpack.c.l.b16 %v1867
    %v1914 = vpack.c.b16 %v1899, %v1898
    %v1915 = vpack.c.b16 %v1901, %v1900
    %v1916 = vpack.c.b16 %v1903, %v1902
    %v1917 = vpack.c.b16 %v1905, %v1904
    %v1918 = vpack.c.b16 %v1907, %v1906
    %v1919 = vpack.c.b16 %v1909, %v1908
    %v1920 = vpack.c.b16 %v1911, %v1910
    %v1921 = vpack.c.b16 %v1913, %v1912
    %1930 = vmatprep.subr.bf16.mxu0 0
    %1931 = vmatpush1.bf16.msra.mxu0 %v1921
    %1932 = vmatprep.subr.bf16.mxu0 0
    %1933 = vmatpush1.bf16.msra.mxu0 %v1920
    %1934 = vmatprep.subr.bf16.mxu0 0
    %1935 = vmatpush1.bf16.msra.mxu0 %v1919
    %1936 = vmatprep.subr.bf16.mxu0 0
    %1937 = vmatpush1.bf16.msra.mxu0 %v1918
    %1938 = vmatprep.subr.bf16.mxu0 0
    %1939 = vmatpush1.bf16.msra.mxu0 %v1917
    %1940 = vmatprep.subr.bf16.mxu0 0
    %1941 = vmatpush1.bf16.msra.mxu0 %v1916
    %1942 = vmatprep.subr.bf16.mxu0 0
    %1943 = vmatpush1.bf16.msra.mxu0 %v1915
    %1944 = vmatprep.subr.bf16.mxu0 0
    %1945 = vmatpush1.bf16.msra.mxu0 %v1914
    %1946 = vmatprep.subr.bf16.mxu0 0
    %1947 = vmatpush2.bf16.msra.mxu0 0
    %1948 = vmatprep.subr.bf16.mxu0 0
    %1949 = vmatpush2.bf16.msra.mxu0 0
    %1950 = vmatprep.subr.bf16.mxu0 0
    %1951 = vmatpush2.bf16.msra.mxu0 0
    %1952 = vmatprep.subr.bf16.mxu0 0
    %1953 = vmatpush2.bf16.msra.mxu0 0
    %1954 = vmatprep.subr.bf16.mxu0 0
    %1955 = vmatpush2.bf16.msra.mxu0 0
    %1956 = vmatprep.subr.bf16.mxu0 0
    %1957 = vmatpush2.bf16.msra.mxu0 0
    %1958 = vmatprep.subr.bf16.mxu0 0
    %1959 = vmatpush2.bf16.msra.mxu0 0
    %1960 = vmatprep.subr.bf16.mxu0 0
    %1961 = vmatpush2.bf16.msra.mxu0 0
    %1962 = vmatprep.mubr.bf16.mxu0 0
    %1963 = vmatmul.mubr.bf16.gmra.mxu0 %v1880
    %v1964 = vpop.f32.mrf.mxu0
    %v1965 = vadd.f32 %v1873, %v1964
    %v1966 = vpop.f32.mrf.mxu0
    %v1967 = vpop.f32.mrf.mxu0
    %v1968 = vpop.f32.mrf.mxu0
    %1969 = vdwg.mxu0
    %v1970 = vpack.c.bf16 %v1965, %v1965
    %v1971 = vld [vmem:[#allocation10] sm:$0xf]
    %v1972 = vld [vmem:[#allocation10 + $0x4] sm:$0xf]
    %v1973 = vld [vmem:[#allocation10 + $0x8] sm:$0xf]
    %v1974 = vld [vmem:[#allocation10 + $0xc] sm:$0xf]
    %v1975 = vld [vmem:[#allocation10 + $0x10] sm:$0xf]
    %v1976 = vld [vmem:[#allocation10 + $0x14] sm:$0xf]
    %v1977 = vld [vmem:[#allocation10 + $0x18] sm:$0xf]
    %v1978 = vld [vmem:[#allocation10 + $0x1c] sm:$0xf]
    %v1979 = vld [vmem:[#allocation10 + $0x20] sm:$0xf]
    %v1980 = vld [vmem:[#allocation10 + $0x24] sm:$0xf]
    %v1981 = vld [vmem:[#allocation10 + $0x28] sm:$0xf]
    %v1982 = vld [vmem:[#allocation10 + $0x2c] sm:$0xf]
    %v1983 = vld [vmem:[#allocation10 + $0x30] sm:$0xf]
    %v1984 = vld [vmem:[#allocation10 + $0x34] sm:$0xf]
    %v1985 = vld [vmem:[#allocation10 + $0x38] sm:$0xf]
    %v1986 = vld [vmem:[#allocation10 + $0x3c] sm:$0xf]
    %v1987 = vld [vmem:[%s15] sm:$0x1]
    %v1989 = vlaneseq
    %v1990 = vshrl.u32 %v1989, 7
    %v1991 = vsub.s32 0, %v1990
    %v1992 = vrot.slane %v1987, %v1991
    %v2010 = vunpack.c.l.b16 %v1971
    %v2011 = vunpack.c.l.b16 %v1972
    %v2012 = vunpack.c.l.b16 %v1973
    %v2013 = vunpack.c.l.b16 %v1974
    %v2014 = vunpack.c.l.b16 %v1975
    %v2015 = vunpack.c.l.b16 %v1976
    %v2016 = vunpack.c.l.b16 %v1977
    %v2017 = vunpack.c.l.b16 %v1978
    %v2018 = vunpack.c.l.b16 %v1979
    %v2019 = vunpack.c.l.b16 %v1980
    %v2020 = vunpack.c.l.b16 %v1981
    %v2021 = vunpack.c.l.b16 %v1982
    %v2022 = vunpack.c.l.b16 %v1983
    %v2023 = vunpack.c.l.b16 %v1984
    %v2024 = vunpack.c.l.b16 %v1985
    %v2025 = vunpack.c.l.b16 %v1986
    %v2026 = vpack.c.b16 %v2011, %v2010
    %v2027 = vpack.c.b16 %v2013, %v2012
    %v2028 = vpack.c.b16 %v2015, %v2014
    %v2029 = vpack.c.b16 %v2017, %v2016
    %v2030 = vpack.c.b16 %v2019, %v2018
    %v2031 = vpack.c.b16 %v2021, %v2020
    %v2032 = vpack.c.b16 %v2023, %v2022
    %v2033 = vpack.c.b16 %v2025, %v2024
    %2042 = vmatprep.subr.bf16.mxu0 0
    %2043 = vmatpush1.bf16.msra.mxu0 %v2033
    %2044 = vmatprep.subr.bf16.mxu0 0
    %2045 = vmatpush1.bf16.msra.mxu0 %v2032
    %2046 = vmatprep.subr.bf16.mxu0 0
    %2047 = vmatpush1.bf16.msra.mxu0 %v2031
    %2048 = vmatprep.subr.bf16.mxu0 0
    %2049 = vmatpush1.bf16.msra.mxu0 %v2030
    %2050 = vmatprep.subr.bf16.mxu0 0
    %2051 = vmatpush1.bf16.msra.mxu0 %v2029
    %2052 = vmatprep.subr.bf16.mxu0 0
    %2053 = vmatpush1.bf16.msra.mxu0 %v2028
    %2054 = vmatprep.subr.bf16.mxu0 0
    %2055 = vmatpush1.bf16.msra.mxu0 %v2027
    %2056 = vmatprep.subr.bf16.mxu0 0
    %2057 = vmatpush1.bf16.msra.mxu0 %v2026
    %2058 = vmatprep.subr.bf16.mxu0 0
    %2059 = vmatpush2.bf16.msra.mxu0 0
    %2060 = vmatprep.subr.bf16.mxu0 0
    %2061 = vmatpush2.bf16.msra.mxu0 0
    %2062 = vmatprep.subr.bf16.mxu0 0
    %2063 = vmatpush2.bf16.msra.mxu0 0
    %2064 = vmatprep.subr.bf16.mxu0 0
    %2065 = vmatpush2.bf16.msra.mxu0 0
    %2066 = vmatprep.subr.bf16.mxu0 0
    %2067 = vmatpush2.bf16.msra.mxu0 0
    %2068 = vmatprep.subr.bf16.mxu0 0
    %2069 = vmatpush2.bf16.msra.mxu0 0
    %2070 = vmatprep.subr.bf16.mxu0 0
    %2071 = vmatpush2.bf16.msra.mxu0 0
    %2072 = vmatprep.subr.bf16.mxu0 0
    %2073 = vmatpush2.bf16.msra.mxu0 0
    %2074 = vmatprep.mubr.bf16.mxu0 0
    %2075 = vmatmul.mubr.bf16.gmra.mxu0 %v1970
    %v2076 = vpop.f32.mrf.mxu0
    %v2077 = vadd.f32 %v1992, %v2076
    %v2078 = vpop.f32.mrf.mxu0
    %v2079 = vpop.f32.mrf.mxu0
    %v2080 = vpop.f32.mrf.mxu0
    %2081 = vdwg.mxu0
    %v2082 = vmax.f32 %v2077, 0.0
    %v2083 = vpack.c.bf16 %v2082, %v2082
    %v2084 = vld [vmem:[#allocation11] sm:$0xf]
    %v2085 = vld [vmem:[#allocation11 + $0x4] sm:$0xf]
    %v2086 = vld [vmem:[#allocation11 + $0x8] sm:$0xf]
    %v2087 = vld [vmem:[#allocation11 + $0xc] sm:$0xf]
    %v2088 = vld [vmem:[#allocation11 + $0x10] sm:$0xf]
    %v2089 = vld [vmem:[#allocation11 + $0x14] sm:$0xf]
    %v2090 = vld [vmem:[#allocation11 + $0x18] sm:$0xf]
    %v2091 = vld [vmem:[#allocation11 + $0x1c] sm:$0xf]
    %v2092 = vld [vmem:[#allocation11 + $0x20] sm:$0xf]
    %v2093 = vld [vmem:[#allocation11 + $0x24] sm:$0xf]
    %v2094 = vld [vmem:[#allocation11 + $0x28] sm:$0xf]
    %v2095 = vld [vmem:[#allocation11 + $0x2c] sm:$0xf]
    %v2096 = vld [vmem:[#allocation11 + $0x30] sm:$0xf]
    %v2097 = vld [vmem:[#allocation11 + $0x34] sm:$0xf]
    %v2098 = vld [vmem:[#allocation11 + $0x38] sm:$0xf]
    %v2099 = vld [vmem:[#allocation11 + $0x3c] sm:$0xf]
    %v2100 = vld [vmem:[%s17] sm:$0x1]
    %v2102 = vlaneseq
    %v2103 = vshrl.u32 %v2102, 7
    %v2104 = vsub.s32 0, %v2103
    %v2105 = vrot.slane %v2100, %v2104
    %v2123 = vunpack.c.l.b16 %v2084
    %v2124 = vunpack.c.l.b16 %v2085
    %v2125 = vunpack.c.l.b16 %v2086
    %v2126 = vunpack.c.l.b16 %v2087
    %v2127 = vunpack.c.l.b16 %v2088
    %v2128 = vunpack.c.l.b16 %v2089
    %v2129 = vunpack.c.l.b16 %v2090
    %v2130 = vunpack.c.l.b16 %v2091
    %v2131 = vunpack.c.l.b16 %v2092
    %v2132 = vunpack.c.l.b16 %v2093
    %v2133 = vunpack.c.l.b16 %v2094
    %v2134 = vunpack.c.l.b16 %v2095
    %v2135 = vunpack.c.l.b16 %v2096
    %v2136 = vunpack.c.l.b16 %v2097
    %v2137 = vunpack.c.l.b16 %v2098
    %v2138 = vunpack.c.l.b16 %v2099
    %v2139 = vpack.c.b16 %v2124, %v2123
    %v2140 = vpack.c.b16 %v2126, %v2125
    %v2141 = vpack.c.b16 %v2128, %v2127
    %v2142 = vpack.c.b16 %v2130, %v2129
    %v2143 = vpack.c.b16 %v2132, %v2131
    %v2144 = vpack.c.b16 %v2134, %v2133
    %v2145 = vpack.c.b16 %v2136, %v2135
    %v2146 = vpack.c.b16 %v2138, %v2137
    %2155 = vmatprep.subr.bf16.mxu0 0
    %2156 = vmatpush1.bf16.msra.mxu0 %v2146
    %2157 = vmatprep.subr.bf16.mxu0 0
    %2158 = vmatpush1.bf16.msra.mxu0 %v2145
    %2159 = vmatprep.subr.bf16.mxu0 0
    %2160 = vmatpush1.bf16.msra.mxu0 %v2144
    %2161 = vmatprep.subr.bf16.mxu0 0
    %2162 = vmatpush1.bf16.msra.mxu0 %v2143
    %2163 = vmatprep.subr.bf16.mxu0 0
    %2164 = vmatpush1.bf16.msra.mxu0 %v2142
    %2165 = vmatprep.subr.bf16.mxu0 0
    %2166 = vmatpush1.bf16.msra.mxu0 %v2141
    %2167 = vmatprep.subr.bf16.mxu0 0
    %2168 = vmatpush1.bf16.msra.mxu0 %v2140
    %2169 = vmatprep.subr.bf16.mxu0 0
    %2170 = vmatpush1.bf16.msra.mxu0 %v2139
    %2171 = vmatprep.subr.bf16.mxu0 0
    %2172 = vmatpush2.bf16.msra.mxu0 0
    %2173 = vmatprep.subr.bf16.mxu0 0
    %2174 = vmatpush2.bf16.msra.mxu0 0
    %2175 = vmatprep.subr.bf16.mxu0 0
    %2176 = vmatpush2.bf16.msra.mxu0 0
    %2177 = vmatprep.subr.bf16.mxu0 0
    %2178 = vmatpush2.bf16.msra.mxu0 0
    %2179 = vmatprep.subr.bf16.mxu0 0
    %2180 = vmatpush2.bf16.msra.mxu0 0
    %2181 = vmatprep.subr.bf16.mxu0 0
    %2182 = vmatpush2.bf16.msra.mxu0 0
    %2183 = vmatprep.subr.bf16.mxu0 0
    %2184 = vmatpush2.bf16.msra.mxu0 0
    %2185 = vmatprep.subr.bf16.mxu0 0
    %2186 = vmatpush2.bf16.msra.mxu0 0
    %2187 = vmatprep.mubr.bf16.mxu0 0
    %2188 = vmatmul.mubr.bf16.gmra.mxu0 %v2083
    %v2189 = vpop.f32.mrf.mxu0
    %v2190 = vadd.f32 %v2105, %v2189
    %v2191 = vpop.f32.mrf.mxu0
    %v2192 = vpop.f32.mrf.mxu0
    %v2193 = vpop.f32.mrf.mxu0
    %2194 = vdwg.mxu0
    %v2197 = vunpack.c.l.s4 1966171168
    %v2198 = vunpack.c.0.s8 %v2197
    %v2199 = vlaneseq
    %v2200 = vshrl.u32 %v2199, 7
    %v2201 = vsub.s32 %v2198, %v2200
    %v2202 = vrot.slane %v2190, %v2201
    %v2203 = vcombine.high %v2202, %v2202
    %v2205 = vunpack.c.l.s4 1966171168
    %v2206 = vunpack.c.0.s8 %v2205
    %v2207 = vlaneseq
    %v2208 = vshrl.u32 %v2207, 7
    %v2209 = vsub.s32 %v2206, %v2208
    %v2210 = vrot.slane %v2202, %v2209
    %v2212 = vunpack.c.l.s4 1966171168
    %v2213 = vunpack.c.0.s8 %v2212
    %v2214 = vlaneseq
    %v2215 = vshrl.u32 %v2214, 7
    %v2216 = vsub.s32 %v2213, %v2215
    %v2217 = vrot.slane %v2203, %v2216
    %2220 = vst [vmem:[#allocation13] sm:$0x1] %v2210
    %2221 = vst [vmem:[#allocation13 + $0x1] sm:$0x1] %v2217
    // Predicated region
    $region98: #{tpu_custom_call.1} parent=1 // pred_check
      _
    $region99: #{tpu_custom_call.1} parent=1 // pred_check_branch
      %2223 = sbr.rel (0) target = $region101
    $region100: #{tpu_custom_call.1} parent=1 // pred_region
      %s2225 = ssub.s32 32, 32
      %2226 = vsyncadd [#allocation4], %s2225
      %s2227 = sshll.u32 [#allocation13], 4
      %s2228 = int_to_ptr.vmem [resolvable:$true] %s2227
      %2233 = dma.vmem_to_hbm [thread:$0]  %s2228, 32, %s18, [#allocation4], 16, 16, 1
    $region101: #{tpu_custom_call.1} parent=1 // pred_fallthru
      _
    // Predicated region
    $region102: #{tpu_custom_call.1} parent=1 // pred_check
      _
    $region103: #{tpu_custom_call.1} parent=1 // pred_check_branch
      %2235 = sbr.rel (0) target = $region105
    $region104: #{tpu_custom_call.1} parent=1 // pred_region
      %2236 = dma.done [#allocation4], 32
    $region105: #{tpu_custom_call.1} parent=1 // pred_fallthru
      _
    %2237 = vsyncpa [#allocation3], 1
    %2238 = vsyncpa [#allocation6], 1
    %2239 = vsyncpa [#allocation9], 1
    %2240 = vsyncpa [#allocation12], 1
    %2241 = vsyncpa [#allocation4], 1

</llo_original>
